<compile_context>
chip_gen: v7x
topology: tpu7x:2x2x1
jax: 0.10.0
libtpu: 0.0.40
codegen_flags: <defaults>
</compile_context>

<pallas_src>
import math

import numpy as np
import jax
import jax.numpy as jnp
from jax.experimental import pallas as pl
from jax.experimental.pallas import tpu as pltpu


# (name, kernel, pad, stride) for the four conv layers of ComplexCNN.
CONV_CFG = (("conv1", 5, 2, 2), ("conv2", 3, 1, 2),
            ("conv3", 3, 1, 2), ("conv4", 3, 1, 2))

NUM_CLASSES = 3
OUT_LANES = 128   # lane-padded logits width (sliced to NUM_CLASSES outside kernel)


# --------------------- host-side operator preparation -----------------------

def _conv_as_matmul_operators(w_oihw, bias, B, H, W, stride, pad):
    """Lower Conv2d(stride, pad) to two stacked dense matmul operators.

    Acting on a lane-dense NHWC slab X = reshape(NHWC, (B*H, W*Cin)):
        T   = S_stack @ X                      # (K*B*Ho, W*Cin)  row gather
        T'  = lane-concat of the K row blocks  # (B*Ho, K*W*Cin)
        O   = T' @ M_stack + bias              # (B*Ho, Wo*Cout)
    S_stack is 0/1 (stride + zero-pad in H); M_stack fuses the stride/pad
    gather in W with the Cin->Cout contraction.
    """
    w = np.asarray(w_oihw, np.float32)            # (Cout, Cin, K, K)
    cout, cin, K, _ = w.shape
    Ho = (H + 2 * pad - K) // stride + 1
    Wo = (W + 2 * pad - K) // stride + 1

    S = np.zeros((K * B * Ho, B * H), np.float32)       # stacked row selection
    M = np.zeros((K * W * cin, Wo * cout), np.float32)  # stacked W-gather + contraction
    for kh in range(K):
        for b in range(B):
            for ho in range(Ho):
                h = stride * ho + kh - pad
                if 0 <= h < H:
                    S[kh * B * Ho + b * Ho + ho, b * H + h] = 1.0
        for wo in range(Wo):
            for kw in range(K):
                wc = stride * wo + kw - pad
                if 0 <= wc < W:
                    r0 = kh * W * cin + wc * cin
                    M[r0:r0 + cin, wo * cout:(wo + 1) * cout] = w[:, :, kh, kw].T
    bias_row = np.tile(np.asarray(bias, np.float32).reshape(1, 1, cout),
                       (1, Wo, 1)).reshape(1, Wo * cout)
    return S, M, bias_row, Ho, Wo, cout


def prepare_operators(params, B, in_channel, H, W):
    """One-time (outside jit) layout prep.

    Conv operators are stored bf16 (S is 0/1 -> exact; M within tolerance);
    biases / pool / fc stay f32 for f32 VPU math and safer tail numerics.
    """
    ops = []
    h, w, c = H, W, in_channel
    for name, k, pad, stride in CONV_CFG:
        w_oihw, b = params[name]
        S, M, brow, h, w, c = _conv_as_matmul_operators(w_oihw, b, B, h, w, stride, pad)
        ops += [jnp.asarray(S, jnp.bfloat16),
                jnp.asarray(M, jnp.bfloat16),
                jnp.asarray(brow, jnp.float32)]
    assert h == 2 and w == 2 and c == 32, (h, w, c)

    # MaxPool2d(2) row-pair selection over the (B*2, C) column-max slab,
    # stacked into ONE (2B, 2B) operator: rows [0:B] pick h=0, rows [B:2B] pick h=1.
    pool_sel = np.zeros((2 * B, 2 * B), np.float32)
    for b in range(B):
        pool_sel[b, 2 * b] = 1.0
        pool_sel[B + b, 2 * b + 1] = 1.0
    ops.append(jnp.asarray(pool_sel, jnp.float32))

    w1, b1 = params["fc1"]          # (128, 32), (128,)
    w2, b2 = params["fc2"]          # (3, 128),  (3,)
    w1_t = np.asarray(w1, np.float32).T                          # (32, 128)
    b1_r = np.asarray(b1, np.float32).reshape(1, -1)             # (1, 128)
    # Lane-pad fc2 so the final store is a full (B, 128) unmasked store.
    w2_t = np.zeros((128, OUT_LANES), np.float32)
    w2_t[:, :NUM_CLASSES] = np.asarray(w2, np.float32).T
    b2_r = np.zeros((1, OUT_LANES), np.float32)
    b2_r[:, :NUM_CLASSES] = np.asarray(b2, np.float32).reshape(1, -1)
    ops += [jnp.asarray(w1_t), jnp.asarray(b1_r), jnp.asarray(w2_t), jnp.asarray(b2_r)]
    return tuple(ops)


# ------------------------------ fused kernel --------------------------------

def _fused_forward_kernel(x_ref,
                          s1_ref, m1_ref, c1b_ref,
                          s2_ref, m2_ref, c2b_ref,
                          s3_ref, m3_ref, c3b_ref,
                          s4_ref, m4_ref, c4b_ref,
                          pool_ref, w1_ref, b1_ref, w2_ref, b2_ref,
                          out_ref):
    def conv_relu(x_bf16, s_ref, m_ref, bias_ref):
        # Static shape algebra: K and the output row count come from operand shapes.
        k = m_ref.shape[0] // x_bf16.shape[1]          # kernel height
        rows_out = s_ref.shape[0] // k                 # B * Ho
        # 1) single stacked row-gather dot (S is 0/1, bf16 exact).
        t = jnp.dot(s_ref[...], x_bf16, preferred_element_type=jnp.float32)
        # 2) lane-concat the K 128-wide row blocks (free vreg arrangement) and
        #    issue ONE deep-contraction dot against the stacked M operator.
        t = jnp.concatenate(
            [t[kh * rows_out:(kh + 1) * rows_out, :] for kh in range(k)], axis=1)
        u = jnp.dot(t.astype(jnp.bfloat16), m_ref[...],
                    preferred_element_type=jnp.float32)
        return jnp.maximum(u + bias_ref[...], 0.0)     # bias + ReLU in f32

    x = x_ref[...]                                               # bf16 (B*32, 32*Cin)
    x = conv_relu(x, s1_ref, m1_ref, c1b_ref).astype(jnp.bfloat16)  # (B*16, 128)
    x = conv_relu(x, s2_ref, m2_ref, c2b_ref).astype(jnp.bfloat16)  # (B*8,  128)
    x = conv_relu(x, s3_ref, m3_ref, c3b_ref).astype(jnp.bfloat16)  # (B*4,  128)
    x = conv_relu(x, s4_ref, m4_ref, c4b_ref)                       # f32 (B*2, 64)

    # MaxPool2d(2): the (B*2, 2*C) slab is NHWC (B, 2, 2, C); max over the 2x2 window.
    c = x.shape[1] // 2
    colmax = jnp.maximum(x[:, :c], x[:, c:])                     # max over w -> (2B, C)
    y = jnp.dot(pool_ref[...], colmax, preferred_element_type=jnp.float32)
    nb = pool_ref.shape[0] // 2
    pooled = jnp.maximum(y[:nb, :], y[nb:, :])                   # max over h -> (B, C)

    # TODO(synk): Dropout(0.25) is identity at inference (eval mode); training RNG mask omitted.
    h = jnp.maximum(
        jnp.dot(pooled, w1_ref[...], preferred_element_type=jnp.float32) + b1_ref[...],
        0.0)                                                     # (B, 128)
    # Lane-padded logits: (B, 128) full-width store; sliced to 3 outside the kernel.
    out_ref[...] = (jnp.dot(h, w2_ref[...], preferred_element_type=jnp.float32)
                    + b2_ref[...])


def _fused_call(x2d, ops, B):
    n_in = 1 + len(ops)
    return pl.pallas_call(
        _fused_forward_kernel,
        out_shape=jax.ShapeDtypeStruct((B, OUT_LANES), jnp.float32),
        in_specs=[pl.BlockSpec(memory_space=pltpu.MemorySpace.VMEM)] * n_in,
        out_specs=pl.BlockSpec(memory_space=pltpu.MemorySpace.VMEM),
    )(x2d, *ops)


@jax.jit
def complex_cnn_forward(x_nchw, ops):
    B, Cin, H, W = x_nchw.shape
    # Only in-jit glue: NCHW (PyTorch) -> lane-dense 2-D NHWC slab, cast to bf16.
    x2d = jnp.transpose(x_nchw, (0, 2, 3, 1)).astype(jnp.bfloat16).reshape(B * H, W * Cin)
    out_padded = _fused_call(x2d, ops, B)
    return out_padded[:, :NUM_CLASSES]


# ------------------------- parameters & reference ---------------------------

def init_params(in_channel, key):
    """Deterministic synthetic parameters matching ComplexCNN's shapes."""
    keys = jax.random.split(key, 12)

    def conv_init(kw_key, kb_key, cout, cin, k):
        bound = 1.0 / math.sqrt(cin * k * k)
        w = jax.random.uniform(kw_key, (cout, cin, k, k), jnp.float32, -bound, bound)
        b = jax.random.uniform(kb_key, (cout,), jnp.float32, -bound, bound)
        return w, b

    def fc_init(kw_key, kb_key, cout, cin):
        bound = 1.0 / math.sqrt(cin)
        w = jax.random.uniform(kw_key, (cout, cin), jnp.float32, -bound, bound)
        b = jax.random.uniform(kb_key, (cout,), jnp.float32, -bound, bound)
        return w, b

    return {
        "conv1": conv_init(keys[0], keys[1], 8, in_channel, 5),
        "conv2": conv_init(keys[2], keys[3], 16, 8, 3),
        "conv3": conv_init(keys[4], keys[5], 32, 16, 3),
        "conv4": conv_init(keys[6], keys[7], 32, 32, 3),
        "fc1":   fc_init(keys[8], keys[9], 128, 32),
        "fc2":   fc_init(keys[10], keys[11], 3, 128),
    }


def reference_forward(x_nchw, params):
    """Plain-JAX (XLA, f32) reference of ComplexCNN.forward for validation."""
    x = jnp.transpose(x_nchw, (0, 2, 3, 1)).astype(jnp.float32)
    for name, k, pad, stride in CONV_CFG:
        w, b = params[name]
        w_hwio = jnp.transpose(jnp.asarray(w, jnp.float32), (2, 3, 1, 0))
        x = jax.lax.conv_general_dilated(
            x, w_hwio, window_strides=(stride, stride),
            padding=[(pad, pad), (pad, pad)],
            dimension_numbers=("NHWC", "HWIO", "NHWC"))
        x = jnp.maximum(x + jnp.asarray(b, jnp.float32), 0.0)
    pooled = jnp.max(x, axis=(1, 2))                          # (B, 32)
    w1, b1 = params["fc1"]
    w2, b2 = params["fc2"]
    h = jnp.maximum(pooled @ jnp.asarray(w1).T + jnp.asarray(b1), 0.0)
    return h @ jnp.asarray(w2).T + jnp.asarray(b2)


if __name__ == "__main__":
    key = jax.random.PRNGKey(0)
    k_x, k_p = jax.random.split(key)

    # Spatial extent must be 32 so that 4 stride-2 convs + MaxPool(2) give
    # 32*1*1 features, matching fc1 = Linear(32, 128) and reshape(-1, 32).
    B, C_IN, H, W = 4, 4, 32, 32
    x = jax.random.normal(k_x, (B, C_IN, H, W), jnp.float32)  # NCHW input
    params = init_params(C_IN, k_p)
    ops = prepare_operators(params, B, C_IN, H, W)            # one-time, outside jit

    out = jax.block_until_ready(complex_cnn_forward(x, ops))
    assert out.shape == (B, NUM_CLASSES), out.shape
    assert out.dtype == jnp.float32

    ref = jax.block_until_ready(reference_forward(x, params))
    assert np.allclose(np.asarray(out), np.asarray(ref), rtol=5e-2, atol=5e-2), (
        np.asarray(out), np.asarray(ref))
    print("KERNEL_OK")
</pallas_src>

<mosaic_0001>
module attributes {stable_mosaic.version = 11 : i64} {
  func.func @_fused_forward_kernel(%arg0: memref<128x128xbf16, #tpu.memory_space<vmem>>, %arg1: memref<320x128xbf16, #tpu.memory_space<vmem>>, %arg2: memref<640x128xbf16, #tpu.memory_space<vmem>>, %arg3: memref<1x128xf32, #tpu.memory_space<vmem>>, %arg4: memref<96x64xbf16, #tpu.memory_space<vmem>>, %arg5: memref<384x128xbf16, #tpu.memory_space<vmem>>, %arg6: memref<1x128xf32, #tpu.memory_space<vmem>>, %arg7: memref<48x32xbf16, #tpu.memory_space<vmem>>, %arg8: memref<384x128xbf16, #tpu.memory_space<vmem>>, %arg9: memref<1x128xf32, #tpu.memory_space<vmem>>, %arg10: memref<24x16xbf16, #tpu.memory_space<vmem>>, %arg11: memref<384x64xbf16, #tpu.memory_space<vmem>>, %arg12: memref<1x64xf32, #tpu.memory_space<vmem>>, %arg13: memref<8x8xf32, #tpu.memory_space<vmem>>, %arg14: memref<32x128xf32, #tpu.memory_space<vmem>>, %arg15: memref<1x128xf32, #tpu.memory_space<vmem>>, %arg16: memref<128x128xf32, #tpu.memory_space<vmem>>, %arg17: memref<1x128xf32, #tpu.memory_space<vmem>>, %arg18: memref<4x128xf32, #tpu.memory_space<vmem>>) attributes {dimension_semantics = [], scalar_prefetch = 0 : i64, scratch_operands = 0 : i64, tpu.core_type = #tpu.core_type<tc>} {
    %c0 = arith.constant 0 : index
    %c0_0 = arith.constant 0 : index
    %0 = vector.load %arg0[%c0, %c0_0] : memref<128x128xbf16, #tpu.memory_space<vmem>>, vector<128x128xbf16>
    %c0_1 = arith.constant 0 : index
    %c0_2 = arith.constant 0 : index
    %1 = vector.load %arg1[%c0_1, %c0_2] : memref<320x128xbf16, #tpu.memory_space<vmem>>, vector<320x128xbf16>
    %cst = arith.constant dense<0.000000e+00> : vector<320x128xf32>
    %2 = tpu.matmul %1, %0, %cst {dimension_numbers = #tpu.dot_dimension_numbers<[1], [0], [0], [1], [0, 0, 1, 1], [], []>} : vector<320x128xbf16>, vector<128x128xbf16>, vector<320x128xf32> -> vector<320x128xf32>
    %3 = vector.extract_strided_slice %2 {offsets = [0, 0], sizes = [64, 128], strides = [1, 1]} : vector<320x128xf32> to vector<64x128xf32>
    %4 = vector.extract_strided_slice %2 {offsets = [64, 0], sizes = [64, 128], strides = [1, 1]} : vector<320x128xf32> to vector<64x128xf32>
    %5 = vector.extract_strided_slice %2 {offsets = [128, 0], sizes = [64, 128], strides = [1, 1]} : vector<320x128xf32> to vector<64x128xf32>
    %6 = vector.extract_strided_slice %2 {offsets = [192, 0], sizes = [64, 128], strides = [1, 1]} : vector<320x128xf32> to vector<64x128xf32>
    %7 = vector.extract_strided_slice %2 {offsets = [256, 0], sizes = [64, 128], strides = [1, 1]} : vector<320x128xf32> to vector<64x128xf32>
    %8 = tpu.concatenate %3, %4, %5, %6, %7 in 1 : vector<64x128xf32>, vector<64x128xf32>, vector<64x128xf32>, vector<64x128xf32>, vector<64x128xf32> -> vector<64x640xf32>
    %9 = arith.truncf %8 : vector<64x640xf32> to vector<64x640xbf16>
    %c0_3 = arith.constant 0 : index
    %c0_4 = arith.constant 0 : index
    %10 = vector.load %arg2[%c0_3, %c0_4] : memref<640x128xbf16, #tpu.memory_space<vmem>>, vector<640x128xbf16>
    %cst_5 = arith.constant dense<0.000000e+00> : vector<64x128xf32>
    %11 = tpu.matmul %9, %10, %cst_5 {dimension_numbers = #tpu.dot_dimension_numbers<[1], [0], [0], [1], [0, 0, 1, 1], [], []>} : vector<64x640xbf16>, vector<640x128xbf16>, vector<64x128xf32> -> vector<64x128xf32>
    %c0_6 = arith.constant 0 : index
    %c0_7 = arith.constant 0 : index
    %12 = vector.load %arg3[%c0_6, %c0_7] : memref<1x128xf32, #tpu.memory_space<vmem>>, vector<1x128xf32>
    %13 = vector.broadcast %12 : vector<1x128xf32> to vector<64x128xf32>
    %14 = arith.addf %11, %13 : vector<64x128xf32>
    %cst_8 = arith.constant 0.000000e+00 : f32
    %15 = vector.broadcast %cst_8 : f32 to vector<64x128xf32>
    %16 = arith.maximumf %14, %15 : vector<64x128xf32>
    %17 = arith.truncf %16 : vector<64x128xf32> to vector<64x128xbf16>
    %c0_9 = arith.constant 0 : index
    %c0_10 = arith.constant 0 : index
    %18 = vector.load %arg4[%c0_9, %c0_10] : memref<96x64xbf16, #tpu.memory_space<vmem>>, vector<96x64xbf16>
    %cst_11 = arith.constant dense<0.000000e+00> : vector<96x128xf32>
    %19 = tpu.matmul %18, %17, %cst_11 {dimension_numbers = #tpu.dot_dimension_numbers<[1], [0], [0], [1], [0, 0, 1, 1], [], []>} : vector<96x64xbf16>, vector<64x128xbf16>, vector<96x128xf32> -> vector<96x128xf32>
    %20 = vector.extract_strided_slice %19 {offsets = [0, 0], sizes = [32, 128], strides = [1, 1]} : vector<96x128xf32> to vector<32x128xf32>
    %21 = vector.extract_strided_slice %19 {offsets = [32, 0], sizes = [32, 128], strides = [1, 1]} : vector<96x128xf32> to vector<32x128xf32>
    %22 = vector.extract_strided_slice %19 {offsets = [64, 0], sizes = [32, 128], strides = [1, 1]} : vector<96x128xf32> to vector<32x128xf32>
    %23 = tpu.concatenate %20, %21, %22 in 1 : vector<32x128xf32>, vector<32x128xf32>, vector<32x128xf32> -> vector<32x384xf32>
    %24 = arith.truncf %23 : vector<32x384xf32> to vector<32x384xbf16>
    %c0_12 = arith.constant 0 : index
    %c0_13 = arith.constant 0 : index
    %25 = vector.load %arg5[%c0_12, %c0_13] : memref<384x128xbf16, #tpu.memory_space<vmem>>, vector<384x128xbf16>
    %cst_14 = arith.constant dense<0.000000e+00> : vector<32x128xf32>
    %26 = tpu.matmul %24, %25, %cst_14 {dimension_numbers = #tpu.dot_dimension_numbers<[1], [0], [0], [1], [0, 0, 1, 1], [], []>} : vector<32x384xbf16>, vector<384x128xbf16>, vector<32x128xf32> -> vector<32x128xf32>
    %c0_15 = arith.constant 0 : index
    %c0_16 = arith.constant 0 : index
    %27 = vector.load %arg6[%c0_15, %c0_16] : memref<1x128xf32, #tpu.memory_space<vmem>>, vector<1x128xf32>
    %28 = vector.broadcast %27 : vector<1x128xf32> to vector<32x128xf32>
    %29 = arith.addf %26, %28 : vector<32x128xf32>
    %cst_17 = arith.constant 0.000000e+00 : f32
    %30 = vector.broadcast %cst_17 : f32 to vector<32x128xf32>
    %31 = arith.maximumf %29, %30 : vector<32x128xf32>
    %32 = arith.truncf %31 : vector<32x128xf32> to vector<32x128xbf16>
    %c0_18 = arith.constant 0 : index
    %c0_19 = arith.constant 0 : index
    %33 = vector.load %arg7[%c0_18, %c0_19] : memref<48x32xbf16, #tpu.memory_space<vmem>>, vector<48x32xbf16>
    %cst_20 = arith.constant dense<0.000000e+00> : vector<48x128xf32>
    %34 = tpu.matmul %33, %32, %cst_20 {dimension_numbers = #tpu.dot_dimension_numbers<[1], [0], [0], [1], [0, 0, 1, 1], [], []>} : vector<48x32xbf16>, vector<32x128xbf16>, vector<48x128xf32> -> vector<48x128xf32>
    %35 = vector.extract_strided_slice %34 {offsets = [0, 0], sizes = [16, 128], strides = [1, 1]} : vector<48x128xf32> to vector<16x128xf32>
    %36 = vector.extract_strided_slice %34 {offsets = [16, 0], sizes = [16, 128], strides = [1, 1]} : vector<48x128xf32> to vector<16x128xf32>
    %37 = vector.extract_strided_slice %34 {offsets = [32, 0], sizes = [16, 128], strides = [1, 1]} : vector<48x128xf32> to vector<16x128xf32>
    %38 = tpu.concatenate %35, %36, %37 in 1 : vector<16x128xf32>, vector<16x128xf32>, vector<16x128xf32> -> vector<16x384xf32>
    %39 = arith.truncf %38 : vector<16x384xf32> to vector<16x384xbf16>
    %c0_21 = arith.constant 0 : index
    %c0_22 = arith.constant 0 : index
    %40 = vector.load %arg8[%c0_21, %c0_22] : memref<384x128xbf16, #tpu.memory_space<vmem>>, vector<384x128xbf16>
    %cst_23 = arith.constant dense<0.000000e+00> : vector<16x128xf32>
    %41 = tpu.matmul %39, %40, %cst_23 {dimension_numbers = #tpu.dot_dimension_numbers<[1], [0], [0], [1], [0, 0, 1, 1], [], []>} : vector<16x384xbf16>, vector<384x128xbf16>, vector<16x128xf32> -> vector<16x128xf32>
    %c0_24 = arith.constant 0 : index
    %c0_25 = arith.constant 0 : index
    %42 = vector.load %arg9[%c0_24, %c0_25] : memref<1x128xf32, #tpu.memory_space<vmem>>, vector<1x128xf32>
    %43 = vector.broadcast %42 : vector<1x128xf32> to vector<16x128xf32>
    %44 = arith.addf %41, %43 : vector<16x128xf32>
    %cst_26 = arith.constant 0.000000e+00 : f32
    %45 = vector.broadcast %cst_26 : f32 to vector<16x128xf32>
    %46 = arith.maximumf %44, %45 : vector<16x128xf32>
    %47 = arith.truncf %46 : vector<16x128xf32> to vector<16x128xbf16>
    %c0_27 = arith.constant 0 : index
    %c0_28 = arith.constant 0 : index
    %48 = vector.load %arg10[%c0_27, %c0_28] : memref<24x16xbf16, #tpu.memory_space<vmem>>, vector<24x16xbf16>
    %cst_29 = arith.constant dense<0.000000e+00> : vector<24x128xf32>
    %49 = tpu.matmul %48, %47, %cst_29 {dimension_numbers = #tpu.dot_dimension_numbers<[1], [0], [0], [1], [0, 0, 1, 1], [], []>} : vector<24x16xbf16>, vector<16x128xbf16>, vector<24x128xf32> -> vector<24x128xf32>
    %50 = vector.extract_strided_slice %49 {offsets = [0, 0], sizes = [8, 128], strides = [1, 1]} : vector<24x128xf32> to vector<8x128xf32>
    %51 = vector.extract_strided_slice %49 {offsets = [8, 0], sizes = [8, 128], strides = [1, 1]} : vector<24x128xf32> to vector<8x128xf32>
    %52 = vector.extract_strided_slice %49 {offsets = [16, 0], sizes = [8, 128], strides = [1, 1]} : vector<24x128xf32> to vector<8x128xf32>
    %53 = tpu.concatenate %50, %51, %52 in 1 : vector<8x128xf32>, vector<8x128xf32>, vector<8x128xf32> -> vector<8x384xf32>
    %54 = arith.truncf %53 : vector<8x384xf32> to vector<8x384xbf16>
    %c0_30 = arith.constant 0 : index
    %c0_31 = arith.constant 0 : index
    %55 = vector.load %arg11[%c0_30, %c0_31] : memref<384x64xbf16, #tpu.memory_space<vmem>>, vector<384x64xbf16>
    %cst_32 = arith.constant dense<0.000000e+00> : vector<8x64xf32>
    %56 = tpu.matmul %54, %55, %cst_32 {dimension_numbers = #tpu.dot_dimension_numbers<[1], [0], [0], [1], [0, 0, 1, 1], [], []>} : vector<8x384xbf16>, vector<384x64xbf16>, vector<8x64xf32> -> vector<8x64xf32>
    %c0_33 = arith.constant 0 : index
    %c0_34 = arith.constant 0 : index
    %57 = vector.load %arg12[%c0_33, %c0_34] : memref<1x64xf32, #tpu.memory_space<vmem>>, vector<1x64xf32>
    %58 = vector.broadcast %57 : vector<1x64xf32> to vector<8x64xf32>
    %59 = arith.addf %56, %58 : vector<8x64xf32>
    %cst_35 = arith.constant 0.000000e+00 : f32
    %60 = vector.broadcast %cst_35 : f32 to vector<8x64xf32>
    %61 = arith.maximumf %59, %60 : vector<8x64xf32>
    %62 = vector.extract_strided_slice %61 {offsets = [0, 0], sizes = [8, 32], strides = [1, 1]} : vector<8x64xf32> to vector<8x32xf32>
    %63 = vector.extract_strided_slice %61 {offsets = [0, 32], sizes = [8, 32], strides = [1, 1]} : vector<8x64xf32> to vector<8x32xf32>
    %64 = arith.maximumf %62, %63 : vector<8x32xf32>
    %c0_36 = arith.constant 0 : index
    %c0_37 = arith.constant 0 : index
    %65 = vector.load %arg13[%c0_36, %c0_37] : memref<8x8xf32, #tpu.memory_space<vmem>>, vector<8x8xf32>
    %cst_38 = arith.constant dense<0.000000e+00> : vector<8x32xf32>
    %66 = tpu.matmul %65, %64, %cst_38 {dimension_numbers = #tpu.dot_dimension_numbers<[1], [0], [0], [1], [0, 0, 1, 1], [], []>} : vector<8x8xf32>, vector<8x32xf32>, vector<8x32xf32> -> vector<8x32xf32>
    %67 = vector.extract_strided_slice %66 {offsets = [0, 0], sizes = [4, 32], strides = [1, 1]} : vector<8x32xf32> to vector<4x32xf32>
    %68 = vector.extract_strided_slice %66 {offsets = [4, 0], sizes = [4, 32], strides = [1, 1]} : vector<8x32xf32> to vector<4x32xf32>
    %69 = arith.maximumf %67, %68 : vector<4x32xf32>
    %c0_39 = arith.constant 0 : index
    %c0_40 = arith.constant 0 : index
    %70 = vector.load %arg14[%c0_39, %c0_40] : memref<32x128xf32, #tpu.memory_space<vmem>>, vector<32x128xf32>
    %cst_41 = arith.constant dense<0.000000e+00> : vector<4x128xf32>
    %71 = tpu.matmul %69, %70, %cst_41 {dimension_numbers = #tpu.dot_dimension_numbers<[1], [0], [0], [1], [0, 0, 1, 1], [], []>} : vector<4x32xf32>, vector<32x128xf32>, vector<4x128xf32> -> vector<4x128xf32>
    %c0_42 = arith.constant 0 : index
    %c0_43 = arith.constant 0 : index
    %72 = vector.load %arg15[%c0_42, %c0_43] : memref<1x128xf32, #tpu.memory_space<vmem>>, vector<1x128xf32>
    %73 = vector.broadcast %72 : vector<1x128xf32> to vector<4x128xf32>
    %74 = arith.addf %71, %73 : vector<4x128xf32>
    %cst_44 = arith.constant 0.000000e+00 : f32
    %75 = vector.broadcast %cst_44 : f32 to vector<4x128xf32>
    %76 = arith.maximumf %74, %75 : vector<4x128xf32>
    %c0_45 = arith.constant 0 : index
    %c0_46 = arith.constant 0 : index
    %77 = vector.load %arg16[%c0_45, %c0_46] : memref<128x128xf32, #tpu.memory_space<vmem>>, vector<128x128xf32>
    %cst_47 = arith.constant dense<0.000000e+00> : vector<4x128xf32>
    %78 = tpu.matmul %76, %77, %cst_47 {dimension_numbers = #tpu.dot_dimension_numbers<[1], [0], [0], [1], [0, 0, 1, 1], [], []>} : vector<4x128xf32>, vector<128x128xf32>, vector<4x128xf32> -> vector<4x128xf32>
    %c0_48 = arith.constant 0 : index
    %c0_49 = arith.constant 0 : index
    %79 = vector.load %arg17[%c0_48, %c0_49] : memref<1x128xf32, #tpu.memory_space<vmem>>, vector<1x128xf32>
    %80 = vector.broadcast %79 : vector<1x128xf32> to vector<4x128xf32>
    %81 = arith.addf %78, %80 : vector<4x128xf32>
    %c0_50 = arith.constant 0 : index
    %c0_51 = arith.constant 0 : index
    %82 = vector.load %arg18[%c0_50, %c0_51] : memref<4x128xf32, #tpu.memory_space<vmem>>, vector<4x128xf32>
    tpu.vector_store %arg18[%c0_50, %c0_51], %81 {strides = array<i32>} : memref<4x128xf32, #tpu.memory_space<vmem>>, vector<4x128xf32>,
    return
  }
}

</mosaic_0001>

<llo_original>
// kernel: complex_cnn_forward.1
$region0: #{complex_cnn_forward.1}
  #allocation0 [shape = 'u32[]', space=smem, size = 0x4, offset = 0x4, fixed_abs, tag = 'smem constant byte address 0x4 - core index']
  #allocation1 [shape = 'u32[144,128]{1,0:T(1,128)}', space=vmem, size = 0x12000, scoped, tag = 'internal scratch']
  %s0 = inlined_call_operand.vmem [shape: bf16[128,128], index: 0, kind: input, shape index: {}]
  %s1 = inlined_call_operand.vmem [shape: bf16[320,128], index: 1, kind: input, shape index: {}]
  %s2 = inlined_call_operand.vmem [shape: bf16[640,128], index: 2, kind: input, shape index: {}]
  %s3 = inlined_call_operand.vmem [shape: f32[1,128], index: 3, kind: input, shape index: {}]
  %s4 = inlined_call_operand.vmem [shape: bf16[96,64], index: 4, kind: input, shape index: {}]
  %s5 = inlined_call_operand.vmem [shape: bf16[384,128], index: 5, kind: input, shape index: {}]
  %s6 = inlined_call_operand.vmem [shape: f32[1,128], index: 6, kind: input, shape index: {}]
  %s7 = inlined_call_operand.vmem [shape: bf16[48,32], index: 7, kind: input, shape index: {}]
  %s8 = inlined_call_operand.vmem [shape: bf16[384,128], index: 8, kind: input, shape index: {}]
  %s9 = inlined_call_operand.vmem [shape: f32[1,128], index: 9, kind: input, shape index: {}]
  %s10 = inlined_call_operand.vmem [shape: bf16[24,16], index: 10, kind: input, shape index: {}]
  %s11 = inlined_call_operand.vmem [shape: bf16[384,64], index: 11, kind: input, shape index: {}]
  %s12 = inlined_call_operand.vmem [shape: f32[1,64], index: 12, kind: input, shape index: {}]
  %s13 = inlined_call_operand.vmem [shape: f32[8,8], index: 13, kind: input, shape index: {}]
  %s14 = inlined_call_operand.vmem [shape: f32[32,128], index: 14, kind: input, shape index: {}]
  %s15 = inlined_call_operand.vmem [shape: f32[1,128], index: 15, kind: input, shape index: {}]
  %s16 = inlined_call_operand.vmem [shape: f32[128,128], index: 16, kind: input, shape index: {}]
  %s17 = inlined_call_operand.vmem [shape: f32[1,128], index: 17, kind: input, shape index: {}]
  %s18 = inlined_call_operand.hbm [shape: f32[4,128], index: 18, kind: output, shape index: {}]
  %s19 = sld [smem:[#allocation0]]
  $region82: #{complex_cnn_forward.1} parent=0
    _
  %s21 = ssub.s32 1, %s19
  %s22 = scalar_select 0, %s21, %s19
  $region1: #{complex_cnn_forward.1} parent=0
    #allocation2 [shape = 'u8[2048]{0}', space=vmem, size = 0x800, scoped, tag = 'output window, operand 0, single buffered']
    #allocation3 [shape = 's32[1]{0}', space=sflag, size = 0x4, scoped, tag = 'scoped memory for complex_cnn_forward.1']
    %23 = vsyncpa [#allocation3], 0
    // Predicated region
    $region2: #{complex_cnn_forward.1} parent=1 // pred_check
      _
    $region3: #{complex_cnn_forward.1} parent=1 // pred_check_branch
      %25 = sbr.rel (0) target = $region5
    $region4: #{complex_cnn_forward.1} parent=1 // pred_region
      _
    $region5: #{complex_cnn_forward.1} parent=1 // pred_fallthru
      _
    // Predicated region
    $region6: #{complex_cnn_forward.1} parent=1 // pred_check
      _
    $region7: #{complex_cnn_forward.1} parent=1 // pred_check_branch
      %27 = sbr.rel (0) target = $region9
    $region8: #{complex_cnn_forward.1} parent=1 // pred_region
      _
    $region9: #{complex_cnn_forward.1} parent=1 // pred_fallthru
      _
    // Predicated region
    $region10: #{complex_cnn_forward.1} parent=1 // pred_check
      _
    $region11: #{complex_cnn_forward.1} parent=1 // pred_check_branch
      %29 = sbr.rel (0) target = $region13
    $region12: #{complex_cnn_forward.1} parent=1 // pred_region
      _
    $region13: #{complex_cnn_forward.1} parent=1 // pred_fallthru
      _
    // Predicated region
    $region14: #{complex_cnn_forward.1} parent=1 // pred_check
      _
    $region15: #{complex_cnn_forward.1} parent=1 // pred_check_branch
      %31 = sbr.rel (0) target = $region17
    $region16: #{complex_cnn_forward.1} parent=1 // pred_region
      _
    $region17: #{complex_cnn_forward.1} parent=1 // pred_fallthru
      _
    // Predicated region
    $region18: #{complex_cnn_forward.1} parent=1 // pred_check
      _
    $region19: #{complex_cnn_forward.1} parent=1 // pred_check_branch
      %33 = sbr.rel (0) target = $region21
    $region20: #{complex_cnn_forward.1} parent=1 // pred_region
      _
    $region21: #{complex_cnn_forward.1} parent=1 // pred_fallthru
      _
    // Predicated region
    $region22: #{complex_cnn_forward.1} parent=1 // pred_check
      _
    $region23: #{complex_cnn_forward.1} parent=1 // pred_check_branch
      %35 = sbr.rel (0) target = $region25
    $region24: #{complex_cnn_forward.1} parent=1 // pred_region
      _
    $region25: #{complex_cnn_forward.1} parent=1 // pred_fallthru
      _
    // Predicated region
    $region26: #{complex_cnn_forward.1} parent=1 // pred_check
      _
    $region27: #{complex_cnn_forward.1} parent=1 // pred_check_branch
      %37 = sbr.rel (0) target = $region29
    $region28: #{complex_cnn_forward.1} parent=1 // pred_region
      _
    $region29: #{complex_cnn_forward.1} parent=1 // pred_fallthru
      _
    // Predicated region
    $region30: #{complex_cnn_forward.1} parent=1 // pred_check
      _
    $region31: #{complex_cnn_forward.1} parent=1 // pred_check_branch
      %39 = sbr.rel (0) target = $region33
    $region32: #{complex_cnn_forward.1} parent=1 // pred_region
      _
    $region33: #{complex_cnn_forward.1} parent=1 // pred_fallthru
      _
    // Predicated region
    $region34: #{complex_cnn_forward.1} parent=1 // pred_check
      _
    $region35: #{complex_cnn_forward.1} parent=1 // pred_check_branch
      %41 = sbr.rel (0) target = $region37
    $region36: #{complex_cnn_forward.1} parent=1 // pred_region
      _
    $region37: #{complex_cnn_forward.1} parent=1 // pred_fallthru
      _
    // Predicated region
    $region38: #{complex_cnn_forward.1} parent=1 // pred_check
      _
    $region39: #{complex_cnn_forward.1} parent=1 // pred_check_branch
      %43 = sbr.rel (0) target = $region41
    $region40: #{complex_cnn_forward.1} parent=1 // pred_region
      _
    $region41: #{complex_cnn_forward.1} parent=1 // pred_fallthru
      _
    // Predicated region
    $region42: #{complex_cnn_forward.1} parent=1 // pred_check
      _
    $region43: #{complex_cnn_forward.1} parent=1 // pred_check_branch
      %45 = sbr.rel (0) target = $region45
    $region44: #{complex_cnn_forward.1} parent=1 // pred_region
      _
    $region45: #{complex_cnn_forward.1} parent=1 // pred_fallthru
      _
    // Predicated region
    $region46: #{complex_cnn_forward.1} parent=1 // pred_check
      _
    $region47: #{complex_cnn_forward.1} parent=1 // pred_check_branch
      %47 = sbr.rel (0) target = $region49
    $region48: #{complex_cnn_forward.1} parent=1 // pred_region
      _
    $region49: #{complex_cnn_forward.1} parent=1 // pred_fallthru
      _
    // Predicated region
    $region50: #{complex_cnn_forward.1} parent=1 // pred_check
      _
    $region51: #{complex_cnn_forward.1} parent=1 // pred_check_branch
      %49 = sbr.rel (0) target = $region53
    $region52: #{complex_cnn_forward.1} parent=1 // pred_region
      _
    $region53: #{complex_cnn_forward.1} parent=1 // pred_fallthru
      _
    // Predicated region
    $region54: #{complex_cnn_forward.1} parent=1 // pred_check
      _
    $region55: #{complex_cnn_forward.1} parent=1 // pred_check_branch
      %51 = sbr.rel (0) target = $region57
    $region56: #{complex_cnn_forward.1} parent=1 // pred_region
      _
    $region57: #{complex_cnn_forward.1} parent=1 // pred_fallthru
      _
    // Predicated region
    $region58: #{complex_cnn_forward.1} parent=1 // pred_check
      _
    $region59: #{complex_cnn_forward.1} parent=1 // pred_check_branch
      %53 = sbr.rel (0) target = $region61
    $region60: #{complex_cnn_forward.1} parent=1 // pred_region
      _
    $region61: #{complex_cnn_forward.1} parent=1 // pred_fallthru
      _
    // Predicated region
    $region62: #{complex_cnn_forward.1} parent=1 // pred_check
      _
    $region63: #{complex_cnn_forward.1} parent=1 // pred_check_branch
      %55 = sbr.rel (0) target = $region65
    $region64: #{complex_cnn_forward.1} parent=1 // pred_region
      _
    $region65: #{complex_cnn_forward.1} parent=1 // pred_fallthru
      _
    // Predicated region
    $region66: #{complex_cnn_forward.1} parent=1 // pred_check
      _
    $region67: #{complex_cnn_forward.1} parent=1 // pred_check_branch
      %57 = sbr.rel (0) target = $region69
    $region68: #{complex_cnn_forward.1} parent=1 // pred_region
      _
    $region69: #{complex_cnn_forward.1} parent=1 // pred_fallthru
      _
    // Predicated region
    $region70: #{complex_cnn_forward.1} parent=1 // pred_check
      _
    $region71: #{complex_cnn_forward.1} parent=1 // pred_check_branch
      %59 = sbr.rel (0) target = $region73
    $region72: #{complex_cnn_forward.1} parent=1 // pred_region
      _
    $region73: #{complex_cnn_forward.1} parent=1 // pred_fallthru
      _
    %v61 = vld [vmem:[%s0] sm:$0xf]
    %v62 = vld [vmem:[%s0 + $0x4] sm:$0xf]
    %v63 = vld [vmem:[%s0 + $0x8] sm:$0xf]
    %v64 = vld [vmem:[%s0 + $0xc] sm:$0xf]
    %v65 = vld [vmem:[%s0 + $0x10] sm:$0xf]
    %v66 = vld [vmem:[%s0 + $0x14] sm:$0xf]
    %v67 = vld [vmem:[%s0 + $0x18] sm:$0xf]
    %v68 = vld [vmem:[%s0 + $0x1c] sm:$0xf]
    %v69 = vld [vmem:[%s0 + $0x20] sm:$0xf]
    %v70 = vld [vmem:[%s0 + $0x24] sm:$0xf]
    %v71 = vld [vmem:[%s0 + $0x28] sm:$0xf]
    %v72 = vld [vmem:[%s0 + $0x2c] sm:$0xf]
    %v73 = vld [vmem:[%s0 + $0x30] sm:$0xf]
    %v74 = vld [vmem:[%s0 + $0x34] sm:$0xf]
    %v75 = vld [vmem:[%s0 + $0x38] sm:$0xf]
    %v76 = vld [vmem:[%s0 + $0x3c] sm:$0xf]
    %v77 = vld [vmem:[%s1] sm:$0xf]
    %v78 = vld [vmem:[%s1 + $0x4] sm:$0xf]
    %v79 = vld [vmem:[%s1 + $0x8] sm:$0xf]
    %v80 = vld [vmem:[%s1 + $0xc] sm:$0xf]
    %v81 = vld [vmem:[%s1 + $0x10] sm:$0xf]
    %v82 = vld [vmem:[%s1 + $0x14] sm:$0xf]
    %v83 = vld [vmem:[%s1 + $0x18] sm:$0xf]
    %v84 = vld [vmem:[%s1 + $0x1c] sm:$0xf]
    %v85 = vld [vmem:[%s1 + $0x20] sm:$0xf]
    %v86 = vld [vmem:[%s1 + $0x24] sm:$0xf]
    %v87 = vld [vmem:[%s1 + $0x28] sm:$0xf]
    %v88 = vld [vmem:[%s1 + $0x2c] sm:$0xf]
    %v89 = vld [vmem:[%s1 + $0x30] sm:$0xf]
    %v90 = vld [vmem:[%s1 + $0x34] sm:$0xf]
    %v91 = vld [vmem:[%s1 + $0x38] sm:$0xf]
    %v92 = vld [vmem:[%s1 + $0x3c] sm:$0xf]
    %v93 = vld [vmem:[%s1 + $0x40] sm:$0xf]
    %v94 = vld [vmem:[%s1 + $0x44] sm:$0xf]
    %v95 = vld [vmem:[%s1 + $0x48] sm:$0xf]
    %v96 = vld [vmem:[%s1 + $0x4c] sm:$0xf]
    %v97 = vld [vmem:[%s1 + $0x50] sm:$0xf]
    %v98 = vld [vmem:[%s1 + $0x54] sm:$0xf]
    %v99 = vld [vmem:[%s1 + $0x58] sm:$0xf]
    %v100 = vld [vmem:[%s1 + $0x5c] sm:$0xf]
    %v101 = vld [vmem:[%s1 + $0x60] sm:$0xf]
    %v102 = vld [vmem:[%s1 + $0x64] sm:$0xf]
    %v103 = vld [vmem:[%s1 + $0x68] sm:$0xf]
    %v104 = vld [vmem:[%s1 + $0x6c] sm:$0xf]
    %v105 = vld [vmem:[%s1 + $0x70] sm:$0xf]
    %v106 = vld [vmem:[%s1 + $0x74] sm:$0xf]
    %v107 = vld [vmem:[%s1 + $0x78] sm:$0xf]
    %v108 = vld [vmem:[%s1 + $0x7c] sm:$0xf]
    %v109 = vld [vmem:[%s1 + $0x80] sm:$0xf]
    %v110 = vld [vmem:[%s1 + $0x84] sm:$0xf]
    %v111 = vld [vmem:[%s1 + $0x88] sm:$0xf]
    %v112 = vld [vmem:[%s1 + $0x8c] sm:$0xf]
    %v113 = vld [vmem:[%s1 + $0x90] sm:$0xf]
    %v114 = vld [vmem:[%s1 + $0x94] sm:$0xf]
    %v115 = vld [vmem:[%s1 + $0x98] sm:$0xf]
    %v116 = vld [vmem:[%s1 + $0x9c] sm:$0xf]
    %v157 = vunpack.c.l.b16 %v77
    %v158 = vunpack.c.l.b16 %v78
    %v159 = vunpack.c.l.b16 %v79
    %v160 = vunpack.c.l.b16 %v80
    %v161 = vunpack.c.l.b16 %v81
    %v162 = vunpack.c.l.b16 %v82
    %v163 = vunpack.c.l.b16 %v83
    %v164 = vunpack.c.l.b16 %v84
    %v165 = vunpack.c.l.b16 %v85
    %v166 = vunpack.c.l.b16 %v86
    %v167 = vunpack.c.l.b16 %v87
    %v168 = vunpack.c.l.b16 %v88
    %v169 = vunpack.c.l.b16 %v89
    %v170 = vunpack.c.l.b16 %v90
    %v171 = vunpack.c.l.b16 %v91
    %v172 = vunpack.c.l.b16 %v92
    %v173 = vunpack.c.l.b16 %v93
    %v174 = vunpack.c.l.b16 %v94
    %v175 = vunpack.c.l.b16 %v95
    %v176 = vunpack.c.l.b16 %v96
    %v177 = vunpack.c.l.b16 %v97
    %v178 = vunpack.c.l.b16 %v98
    %v179 = vunpack.c.l.b16 %v99
    %v180 = vunpack.c.l.b16 %v100
    %v181 = vunpack.c.l.b16 %v101
    %v182 = vunpack.c.l.b16 %v102
    %v183 = vunpack.c.l.b16 %v103
    %v184 = vunpack.c.l.b16 %v104
    %v185 = vunpack.c.l.b16 %v105
    %v186 = vunpack.c.l.b16 %v106
    %v187 = vunpack.c.l.b16 %v107
    %v188 = vunpack.c.l.b16 %v108
    %v189 = vunpack.c.l.b16 %v109
    %v190 = vunpack.c.l.b16 %v110
    %v191 = vunpack.c.l.b16 %v111
    %v192 = vunpack.c.l.b16 %v112
    %v193 = vunpack.c.l.b16 %v113
    %v194 = vunpack.c.l.b16 %v114
    %v195 = vunpack.c.l.b16 %v115
    %v196 = vunpack.c.l.b16 %v116
    %v197 = vpack.c.b16 %v158, %v157
    %v198 = vpack.c.b16 %v160, %v159
    %v199 = vpack.c.b16 %v162, %v161
    %v200 = vpack.c.b16 %v164, %v163
    %v201 = vpack.c.b16 %v166, %v165
    %v202 = vpack.c.b16 %v168, %v167
    %v203 = vpack.c.b16 %v170, %v169
    %v204 = vpack.c.b16 %v172, %v171
    %v205 = vpack.c.b16 %v174, %v173
    %v206 = vpack.c.b16 %v176, %v175
    %v207 = vpack.c.b16 %v178, %v177
    %v208 = vpack.c.b16 %v180, %v179
    %v209 = vpack.c.b16 %v182, %v181
    %v210 = vpack.c.b16 %v184, %v183
    %v211 = vpack.c.b16 %v186, %v185
    %v212 = vpack.c.b16 %v188, %v187
    %v213 = vpack.c.b16 %v190, %v189
    %v214 = vpack.c.b16 %v192, %v191
    %v215 = vpack.c.b16 %v194, %v193
    %v216 = vpack.c.b16 %v196, %v195
    %v253 = vunpack.c.l.b16 %v61
    %v254 = vunpack.c.l.b16 %v62
    %v255 = vunpack.c.l.b16 %v63
    %v256 = vunpack.c.l.b16 %v64
    %v257 = vunpack.c.l.b16 %v65
    %v258 = vunpack.c.l.b16 %v66
    %v259 = vunpack.c.l.b16 %v67
    %v260 = vunpack.c.l.b16 %v68
    %v261 = vunpack.c.l.b16 %v69
    %v262 = vunpack.c.l.b16 %v70
    %v263 = vunpack.c.l.b16 %v71
    %v264 = vunpack.c.l.b16 %v72
    %v265 = vunpack.c.l.b16 %v73
    %v266 = vunpack.c.l.b16 %v74
    %v267 = vunpack.c.l.b16 %v75
    %v268 = vunpack.c.l.b16 %v76
    %v269 = vpack.c.b16 %v254, %v253
    %v270 = vpack.c.b16 %v256, %v255
    %v271 = vpack.c.b16 %v258, %v257
    %v272 = vpack.c.b16 %v260, %v259
    %v273 = vpack.c.b16 %v262, %v261
    %v274 = vpack.c.b16 %v264, %v263
    %v275 = vpack.c.b16 %v266, %v265
    %v276 = vpack.c.b16 %v268, %v267
    %285 = vmatprep.subr.bf16.mxu0 0
    %286 = vmatpush1.bf16.msra.mxu0 %v269
    %287 = vmatprep.subr.bf16.mxu0 0
    %288 = vmatpush1.bf16.msra.mxu0 %v270
    %289 = vmatprep.subr.bf16.mxu0 0
    %290 = vmatpush1.bf16.msra.mxu0 %v271
    %291 = vmatprep.subr.bf16.mxu0 0
    %292 = vmatpush1.bf16.msra.mxu0 %v272
    %293 = vmatprep.subr.bf16.mxu0 0
    %294 = vmatpush1.bf16.msra.mxu0 %v273
    %295 = vmatprep.subr.bf16.mxu0 0
    %296 = vmatpush1.bf16.msra.mxu0 %v274
    %297 = vmatprep.subr.bf16.mxu0 0
    %298 = vmatpush1.bf16.msra.mxu0 %v275
    %299 = vmatprep.subr.bf16.mxu0 0
    %300 = vmatpush1.bf16.msra.mxu0 %v276
    %301 = vmatprep.subr.bf16.mxu0 0
    %302 = vmatpush1.bf16.msra.mxu0 0
    %303 = vmatprep.subr.bf16.mxu0 0
    %304 = vmatpush1.bf16.msra.mxu0 0
    %305 = vmatprep.subr.bf16.mxu0 0
    %306 = vmatpush1.bf16.msra.mxu0 0
    %307 = vmatprep.subr.bf16.mxu0 0
    %308 = vmatpush1.bf16.msra.mxu0 0
    %309 = vmatprep.subr.bf16.mxu0 0
    %310 = vmatpush1.bf16.msra.mxu0 0
    %311 = vmatprep.subr.bf16.mxu0 0
    %312 = vmatpush1.bf16.msra.mxu0 0
    %313 = vmatprep.subr.bf16.mxu0 0
    %314 = vmatpush1.bf16.msra.mxu0 0
    %315 = vmatprep.subr.bf16.mxu0 0
    %316 = vmatpush1.bf16.msra.mxu0 0
    %317 = vmatprep.mubr.bf16.mxu0 0
    %318 = vmatmul.mubr.bf16.gmra.mrb[0].mxu0 %v197
    %v319 = vpop.f32.mrb[0].mxu0
    %v320 = vadd.f32 0.0, %v319
    %v321 = vpop.f32.mrb[0].mxu0
    %v322 = vpop.f32.mrb[0].mxu0
    %v323 = vadd.f32 0.0, %v322
    %v324 = vpop.f32.mrb[0].mxu0
    %325 = vmatprep.mubr.bf16.mxu0 0
    %326 = vmatmul.mubr.bf16.gmra.mrb[0].mxu0 %v198
    %v327 = vpop.f32.mrb[0].mxu0
    %v328 = vadd.f32 0.0, %v327
    %v329 = vpop.f32.mrb[0].mxu0
    %v330 = vpop.f32.mrb[0].mxu0
    %v331 = vadd.f32 0.0, %v330
    %v332 = vpop.f32.mrb[0].mxu0
    %333 = vmatprep.mubr.bf16.mxu0 0
    %334 = vmatmul.mubr.bf16.gmra.mrb[0].mxu0 %v199
    %v335 = vpop.f32.mrb[0].mxu0
    %v336 = vadd.f32 0.0, %v335
    %v337 = vpop.f32.mrb[0].mxu0
    %v338 = vpop.f32.mrb[0].mxu0
    %v339 = vadd.f32 0.0, %v338
    %v340 = vpop.f32.mrb[0].mxu0
    %341 = vmatprep.mubr.bf16.mxu0 0
    %342 = vmatmul.mubr.bf16.gmra.mrb[0].mxu0 %v200
    %v343 = vpop.f32.mrb[0].mxu0
    %v344 = vadd.f32 0.0, %v343
    %v345 = vpop.f32.mrb[0].mxu0
    %v346 = vpop.f32.mrb[0].mxu0
    %v347 = vadd.f32 0.0, %v346
    %v348 = vpop.f32.mrb[0].mxu0
    %349 = vmatprep.mubr.bf16.mxu0 0
    %350 = vmatmul.mubr.bf16.gmra.mrb[0].mxu0 %v201
    %v351 = vpop.f32.mrb[0].mxu0
    %v352 = vadd.f32 0.0, %v351
    %v353 = vpop.f32.mrb[0].mxu0
    %v354 = vpop.f32.mrb[0].mxu0
    %v355 = vadd.f32 0.0, %v354
    %v356 = vpop.f32.mrb[0].mxu0
    %357 = vmatprep.mubr.bf16.mxu0 0
    %358 = vmatmul.mubr.bf16.gmra.mrb[0].mxu0 %v202
    %v359 = vpop.f32.mrb[0].mxu0
    %v360 = vadd.f32 0.0, %v359
    %v361 = vpop.f32.mrb[0].mxu0
    %v362 = vpop.f32.mrb[0].mxu0
    %v363 = vadd.f32 0.0, %v362
    %v364 = vpop.f32.mrb[0].mxu0
    %365 = vmatprep.mubr.bf16.mxu0 0
    %366 = vmatmul.mubr.bf16.gmra.mrb[0].mxu0 %v203
    %v367 = vpop.f32.mrb[0].mxu0
    %v368 = vadd.f32 0.0, %v367
    %v369 = vpop.f32.mrb[0].mxu0
    %v370 = vpop.f32.mrb[0].mxu0
    %v371 = vadd.f32 0.0, %v370
    %v372 = vpop.f32.mrb[0].mxu0
    %373 = vmatprep.mubr.bf16.mxu0 0
    %374 = vmatmul.mubr.bf16.gmra.mrb[0].mxu0 %v204
    %v375 = vpop.f32.mrb[0].mxu0
    %v376 = vadd.f32 0.0, %v375
    %v377 = vpop.f32.mrb[0].mxu0
    %v378 = vpop.f32.mrb[0].mxu0
    %v379 = vadd.f32 0.0, %v378
    %v380 = vpop.f32.mrb[0].mxu0
    %381 = vmatprep.mubr.bf16.mxu0 0
    %382 = vmatmul.mubr.bf16.gmra.mrb[0].mxu0 %v205
    %v383 = vpop.f32.mrb[0].mxu0
    %v384 = vadd.f32 0.0, %v383
    %v385 = vpop.f32.mrb[0].mxu0
    %v386 = vpop.f32.mrb[0].mxu0
    %v387 = vadd.f32 0.0, %v386
    %v388 = vpop.f32.mrb[0].mxu0
    %389 = vmatprep.mubr.bf16.mxu0 0
    %390 = vmatmul.mubr.bf16.gmra.mrb[0].mxu0 %v206
    %v391 = vpop.f32.mrb[0].mxu0
    %v392 = vadd.f32 0.0, %v391
    %v393 = vpop.f32.mrb[0].mxu0
    %v394 = vpop.f32.mrb[0].mxu0
    %v395 = vadd.f32 0.0, %v394
    %v396 = vpop.f32.mrb[0].mxu0
    %397 = vmatprep.mubr.bf16.mxu0 0
    %398 = vmatmul.mubr.bf16.gmra.mrb[0].mxu0 %v207
    %v399 = vpop.f32.mrb[0].mxu0
    %v400 = vadd.f32 0.0, %v399
    %v401 = vpop.f32.mrb[0].mxu0
    %v402 = vpop.f32.mrb[0].mxu0
    %v403 = vadd.f32 0.0, %v402
    %v404 = vpop.f32.mrb[0].mxu0
    %405 = vmatprep.mubr.bf16.mxu0 0
    %406 = vmatmul.mubr.bf16.gmra.mrb[0].mxu0 %v208
    %v407 = vpop.f32.mrb[0].mxu0
    %v408 = vadd.f32 0.0, %v407
    %v409 = vpop.f32.mrb[0].mxu0
    %v410 = vpop.f32.mrb[0].mxu0
    %v411 = vadd.f32 0.0, %v410
    %v412 = vpop.f32.mrb[0].mxu0
    %413 = vmatprep.mubr.bf16.mxu0 0
    %414 = vmatmul.mubr.bf16.gmra.mrb[0].mxu0 %v209
    %v415 = vpop.f32.mrb[0].mxu0
    %v416 = vadd.f32 0.0, %v415
    %v417 = vpop.f32.mrb[0].mxu0
    %v418 = vpop.f32.mrb[0].mxu0
    %v419 = vadd.f32 0.0, %v418
    %v420 = vpop.f32.mrb[0].mxu0
    %421 = vmatprep.mubr.bf16.mxu0 0
    %422 = vmatmul.mubr.bf16.gmra.mrb[0].mxu0 %v210
    %v423 = vpop.f32.mrb[0].mxu0
    %v424 = vadd.f32 0.0, %v423
    %v425 = vpop.f32.mrb[0].mxu0
    %v426 = vpop.f32.mrb[0].mxu0
    %v427 = vadd.f32 0.0, %v426
    %v428 = vpop.f32.mrb[0].mxu0
    %429 = vmatprep.mubr.bf16.mxu0 0
    %430 = vmatmul.mubr.bf16.gmra.mrb[0].mxu0 %v211
    %v431 = vpop.f32.mrb[0].mxu0
    %v432 = vadd.f32 0.0, %v431
    %v433 = vpop.f32.mrb[0].mxu0
    %v434 = vpop.f32.mrb[0].mxu0
    %v435 = vadd.f32 0.0, %v434
    %v436 = vpop.f32.mrb[0].mxu0
    %437 = vmatprep.mubr.bf16.mxu0 0
    %438 = vmatmul.mubr.bf16.gmra.mrb[0].mxu0 %v212
    %v439 = vpop.f32.mrb[0].mxu0
    %v440 = vadd.f32 0.0, %v439
    %v441 = vpop.f32.mrb[0].mxu0
    %v442 = vpop.f32.mrb[0].mxu0
    %v443 = vadd.f32 0.0, %v442
    %v444 = vpop.f32.mrb[0].mxu0
    %445 = vmatprep.mubr.bf16.mxu0 0
    %446 = vmatmul.mubr.bf16.gmra.mrb[0].mxu0 %v213
    %v447 = vpop.f32.mrb[0].mxu0
    %v448 = vadd.f32 0.0, %v447
    %v449 = vpop.f32.mrb[0].mxu0
    %v450 = vpop.f32.mrb[0].mxu0
    %v451 = vadd.f32 0.0, %v450
    %v452 = vpop.f32.mrb[0].mxu0
    %453 = vmatprep.mubr.bf16.mxu0 0
    %454 = vmatmul.mubr.bf16.gmra.mrb[0].mxu0 %v214
    %v455 = vpop.f32.mrb[0].mxu0
    %v456 = vadd.f32 0.0, %v455
    %v457 = vpop.f32.mrb[0].mxu0
    %v458 = vpop.f32.mrb[0].mxu0
    %v459 = vadd.f32 0.0, %v458
    %v460 = vpop.f32.mrb[0].mxu0
    %461 = vmatprep.mubr.bf16.mxu0 0
    %462 = vmatmul.mubr.bf16.gmra.mrb[0].mxu0 %v215
    %v463 = vpop.f32.mrb[0].mxu0
    %v464 = vadd.f32 0.0, %v463
    %v465 = vpop.f32.mrb[0].mxu0
    %v466 = vpop.f32.mrb[0].mxu0
    %v467 = vadd.f32 0.0, %v466
    %v468 = vpop.f32.mrb[0].mxu0
    %469 = vmatprep.mubr.bf16.mxu0 0
    %470 = vmatmul.mubr.bf16.gmra.mrb[0].mxu0 %v216
    %v471 = vpop.f32.mrb[0].mxu0
    %v472 = vadd.f32 0.0, %v471
    %v473 = vpop.f32.mrb[0].mxu0
    %v474 = vpop.f32.mrb[0].mxu0
    %v475 = vadd.f32 0.0, %v474
    %v476 = vpop.f32.mrb[0].mxu0
    %477 = vdwg.mxu0
    %v478 = vpack.c.bf16 %v323, %v320
    %v479 = vpack.c.bf16 %v355, %v352
    %v480 = vpack.c.bf16 %v387, %v384
    %v481 = vpack.c.bf16 %v419, %v416
    %v482 = vpack.c.bf16 %v451, %v448
    %v483 = vpack.c.bf16 %v331, %v328
    %v484 = vpack.c.bf16 %v363, %v360
    %v485 = vpack.c.bf16 %v395, %v392
    %v486 = vpack.c.bf16 %v427, %v424
    %v487 = vpack.c.bf16 %v459, %v456
    %v488 = vpack.c.bf16 %v339, %v336
    %v489 = vpack.c.bf16 %v371, %v368
    %v490 = vpack.c.bf16 %v403, %v400
    %v491 = vpack.c.bf16 %v435, %v432
    %v492 = vpack.c.bf16 %v467, %v464
    %v493 = vpack.c.bf16 %v347, %v344
    %v494 = vpack.c.bf16 %v379, %v376
    %v495 = vpack.c.bf16 %v411, %v408
    %v496 = vpack.c.bf16 %v443, %v440
    %v497 = vpack.c.bf16 %v475, %v472
    %v498 = vld [vmem:[%s2] sm:$0xf]
    %v499 = vld [vmem:[%s2 + $0x4] sm:$0xf]
    %v500 = vld [vmem:[%s2 + $0x8] sm:$0xf]
    %v501 = vld [vmem:[%s2 + $0xc] sm:$0xf]
    %v502 = vld [vmem:[%s2 + $0x10] sm:$0xf]
    %v503 = vld [vmem:[%s2 + $0x14] sm:$0xf]
    %v504 = vld [vmem:[%s2 + $0x18] sm:$0xf]
    %v505 = vld [vmem:[%s2 + $0x1c] sm:$0xf]
    %v506 = vld [vmem:[%s2 + $0x20] sm:$0xf]
    %v507 = vld [vmem:[%s2 + $0x24] sm:$0xf]
    %v508 = vld [vmem:[%s2 + $0x28] sm:$0xf]
    %v509 = vld [vmem:[%s2 + $0x2c] sm:$0xf]
    %v510 = vld [vmem:[%s2 + $0x30] sm:$0xf]
    %v511 = vld [vmem:[%s2 + $0x34] sm:$0xf]
    %v512 = vld [vmem:[%s2 + $0x38] sm:$0xf]
    %v513 = vld [vmem:[%s2 + $0x3c] sm:$0xf]
    %v514 = vld [vmem:[%s2 + $0x40] sm:$0xf]
    %v515 = vld [vmem:[%s2 + $0x44] sm:$0xf]
    %v516 = vld [vmem:[%s2 + $0x48] sm:$0xf]
    %v517 = vld [vmem:[%s2 + $0x4c] sm:$0xf]
    %v518 = vld [vmem:[%s2 + $0x50] sm:$0xf]
    %v519 = vld [vmem:[%s2 + $0x54] sm:$0xf]
    %v520 = vld [vmem:[%s2 + $0x58] sm:$0xf]
    %v521 = vld [vmem:[%s2 + $0x5c] sm:$0xf]
    %v522 = vld [vmem:[%s2 + $0x60] sm:$0xf]
    %v523 = vld [vmem:[%s2 + $0x64] sm:$0xf]
    %v524 = vld [vmem:[%s2 + $0x68] sm:$0xf]
    %v525 = vld [vmem:[%s2 + $0x6c] sm:$0xf]
    %v526 = vld [vmem:[%s2 + $0x70] sm:$0xf]
    %v527 = vld [vmem:[%s2 + $0x74] sm:$0xf]
    %v528 = vld [vmem:[%s2 + $0x78] sm:$0xf]
    %v529 = vld [vmem:[%s2 + $0x7c] sm:$0xf]
    %v530 = vld [vmem:[%s2 + $0x80] sm:$0xf]
    %v531 = vld [vmem:[%s2 + $0x84] sm:$0xf]
    %v532 = vld [vmem:[%s2 + $0x88] sm:$0xf]
    %v533 = vld [vmem:[%s2 + $0x8c] sm:$0xf]
    %v534 = vld [vmem:[%s2 + $0x90] sm:$0xf]
    %v535 = vld [vmem:[%s2 + $0x94] sm:$0xf]
    %v536 = vld [vmem:[%s2 + $0x98] sm:$0xf]
    %v537 = vld [vmem:[%s2 + $0x9c] sm:$0xf]
    %v538 = vld [vmem:[%s2 + $0xa0] sm:$0xf]
    %v539 = vld [vmem:[%s2 + $0xa4] sm:$0xf]
    %v540 = vld [vmem:[%s2 + $0xa8] sm:$0xf]
    %v541 = vld [vmem:[%s2 + $0xac] sm:$0xf]
    %v542 = vld [vmem:[%s2 + $0xb0] sm:$0xf]
    %v543 = vld [vmem:[%s2 + $0xb4] sm:$0xf]
    %v544 = vld [vmem:[%s2 + $0xb8] sm:$0xf]
    %v545 = vld [vmem:[%s2 + $0xbc] sm:$0xf]
    %v546 = vld [vmem:[%s2 + $0xc0] sm:$0xf]
    %v547 = vld [vmem:[%s2 + $0xc4] sm:$0xf]
    %v548 = vld [vmem:[%s2 + $0xc8] sm:$0xf]
    %v549 = vld [vmem:[%s2 + $0xcc] sm:$0xf]
    %v550 = vld [vmem:[%s2 + $0xd0] sm:$0xf]
    %v551 = vld [vmem:[%s2 + $0xd4] sm:$0xf]
    %v552 = vld [vmem:[%s2 + $0xd8] sm:$0xf]
    %v553 = vld [vmem:[%s2 + $0xdc] sm:$0xf]
    %v554 = vld [vmem:[%s2 + $0xe0] sm:$0xf]
    %v555 = vld [vmem:[%s2 + $0xe4] sm:$0xf]
    %v556 = vld [vmem:[%s2 + $0xe8] sm:$0xf]
    %v557 = vld [vmem:[%s2 + $0xec] sm:$0xf]
    %v558 = vld [vmem:[%s2 + $0xf0] sm:$0xf]
    %v559 = vld [vmem:[%s2 + $0xf4] sm:$0xf]
    %v560 = vld [vmem:[%s2 + $0xf8] sm:$0xf]
    %v561 = vld [vmem:[%s2 + $0xfc] sm:$0xf]
    %v562 = vld [vmem:[%s2 + $0x100] sm:$0xf]
    %v563 = vld [vmem:[%s2 + $0x104] sm:$0xf]
    %v564 = vld [vmem:[%s2 + $0x108] sm:$0xf]
    %v565 = vld [vmem:[%s2 + $0x10c] sm:$0xf]
    %v566 = vld [vmem:[%s2 + $0x110] sm:$0xf]
    %v567 = vld [vmem:[%s2 + $0x114] sm:$0xf]
    %v568 = vld [vmem:[%s2 + $0x118] sm:$0xf]
    %v569 = vld [vmem:[%s2 + $0x11c] sm:$0xf]
    %v570 = vld [vmem:[%s2 + $0x120] sm:$0xf]
    %v571 = vld [vmem:[%s2 + $0x124] sm:$0xf]
    %v572 = vld [vmem:[%s2 + $0x128] sm:$0xf]
    %v573 = vld [vmem:[%s2 + $0x12c] sm:$0xf]
    %v574 = vld [vmem:[%s2 + $0x130] sm:$0xf]
    %v575 = vld [vmem:[%s2 + $0x134] sm:$0xf]
    %v576 = vld [vmem:[%s2 + $0x138] sm:$0xf]
    %v577 = vld [vmem:[%s2 + $0x13c] sm:$0xf]
    %v578 = vld [vmem:[%s3] sm:$0x1]
    %v580 = vlaneseq
    %v581 = vshrl.u32 %v580, 7
    %v582 = vsub.s32 0, %v581
    %v583 = vrot.slane %v578, %v582
    %v665 = vunpack.c.l.b16 %v498
    %v666 = vunpack.c.l.b16 %v499
    %v667 = vunpack.c.l.b16 %v500
    %v668 = vunpack.c.l.b16 %v501
    %v669 = vunpack.c.l.b16 %v502
    %v670 = vunpack.c.l.b16 %v503
    %v671 = vunpack.c.l.b16 %v504
    %v672 = vunpack.c.l.b16 %v505
    %v673 = vunpack.c.l.b16 %v506
    %v674 = vunpack.c.l.b16 %v507
    %v675 = vunpack.c.l.b16 %v508
    %v676 = vunpack.c.l.b16 %v509
    %v677 = vunpack.c.l.b16 %v510
    %v678 = vunpack.c.l.b16 %v511
    %v679 = vunpack.c.l.b16 %v512
    %v680 = vunpack.c.l.b16 %v513
    %v681 = vunpack.c.l.b16 %v514
    %v682 = vunpack.c.l.b16 %v515
    %v683 = vunpack.c.l.b16 %v516
    %v684 = vunpack.c.l.b16 %v517
    %v685 = vunpack.c.l.b16 %v518
    %v686 = vunpack.c.l.b16 %v519
    %v687 = vunpack.c.l.b16 %v520
    %v688 = vunpack.c.l.b16 %v521
    %v689 = vunpack.c.l.b16 %v522
    %v690 = vunpack.c.l.b16 %v523
    %v691 = vunpack.c.l.b16 %v524
    %v692 = vunpack.c.l.b16 %v525
    %v693 = vunpack.c.l.b16 %v526
    %v694 = vunpack.c.l.b16 %v527
    %v695 = vunpack.c.l.b16 %v528
    %v696 = vunpack.c.l.b16 %v529
    %v697 = vunpack.c.l.b16 %v530
    %v698 = vunpack.c.l.b16 %v531
    %v699 = vunpack.c.l.b16 %v532
    %v700 = vunpack.c.l.b16 %v533
    %v701 = vunpack.c.l.b16 %v534
    %v702 = vunpack.c.l.b16 %v535
    %v703 = vunpack.c.l.b16 %v536
    %v704 = vunpack.c.l.b16 %v537
    %v705 = vunpack.c.l.b16 %v538
    %v706 = vunpack.c.l.b16 %v539
    %v707 = vunpack.c.l.b16 %v540
    %v708 = vunpack.c.l.b16 %v541
    %v709 = vunpack.c.l.b16 %v542
    %v710 = vunpack.c.l.b16 %v543
    %v711 = vunpack.c.l.b16 %v544
    %v712 = vunpack.c.l.b16 %v545
    %v713 = vunpack.c.l.b16 %v546
    %v714 = vunpack.c.l.b16 %v547
    %v715 = vunpack.c.l.b16 %v548
    %v716 = vunpack.c.l.b16 %v549
    %v717 = vunpack.c.l.b16 %v550
    %v718 = vunpack.c.l.b16 %v551
    %v719 = vunpack.c.l.b16 %v552
    %v720 = vunpack.c.l.b16 %v553
    %v721 = vunpack.c.l.b16 %v554
    %v722 = vunpack.c.l.b16 %v555
    %v723 = vunpack.c.l.b16 %v556
    %v724 = vunpack.c.l.b16 %v557
    %v725 = vunpack.c.l.b16 %v558
    %v726 = vunpack.c.l.b16 %v559
    %v727 = vunpack.c.l.b16 %v560
    %v728 = vunpack.c.l.b16 %v561
    %v729 = vunpack.c.l.b16 %v562
    %v730 = vunpack.c.l.b16 %v563
    %v731 = vunpack.c.l.b16 %v564
    %v732 = vunpack.c.l.b16 %v565
    %v733 = vunpack.c.l.b16 %v566
    %v734 = vunpack.c.l.b16 %v567
    %v735 = vunpack.c.l.b16 %v568
    %v736 = vunpack.c.l.b16 %v569
    %v737 = vunpack.c.l.b16 %v570
    %v738 = vunpack.c.l.b16 %v571
    %v739 = vunpack.c.l.b16 %v572
    %v740 = vunpack.c.l.b16 %v573
    %v741 = vunpack.c.l.b16 %v574
    %v742 = vunpack.c.l.b16 %v575
    %v743 = vunpack.c.l.b16 %v576
    %v744 = vunpack.c.l.b16 %v577
    %v745 = vpack.c.b16 %v666, %v665
    %v746 = vpack.c.b16 %v668, %v667
    %v747 = vpack.c.b16 %v670, %v669
    %v748 = vpack.c.b16 %v672, %v671
    %v749 = vpack.c.b16 %v674, %v673
    %v750 = vpack.c.b16 %v676, %v675
    %v751 = vpack.c.b16 %v678, %v677
    %v752 = vpack.c.b16 %v680, %v679
    %v753 = vpack.c.b16 %v682, %v681
    %v754 = vpack.c.b16 %v684, %v683
    %v755 = vpack.c.b16 %v686, %v685
    %v756 = vpack.c.b16 %v688, %v687
    %v757 = vpack.c.b16 %v690, %v689
    %v758 = vpack.c.b16 %v692, %v691
    %v759 = vpack.c.b16 %v694, %v693
    %v760 = vpack.c.b16 %v696, %v695
    %v761 = vpack.c.b16 %v698, %v697
    %v762 = vpack.c.b16 %v700, %v699
    %v763 = vpack.c.b16 %v702, %v701
    %v764 = vpack.c.b16 %v704, %v703
    %v765 = vpack.c.b16 %v706, %v705
    %v766 = vpack.c.b16 %v708, %v707
    %v767 = vpack.c.b16 %v710, %v709
    %v768 = vpack.c.b16 %v712, %v711
    %v769 = vpack.c.b16 %v714, %v713
    %v770 = vpack.c.b16 %v716, %v715
    %v771 = vpack.c.b16 %v718, %v717
    %v772 = vpack.c.b16 %v720, %v719
    %v773 = vpack.c.b16 %v722, %v721
    %v774 = vpack.c.b16 %v724, %v723
    %v775 = vpack.c.b16 %v726, %v725
    %v776 = vpack.c.b16 %v728, %v727
    %v777 = vpack.c.b16 %v730, %v729
    %v778 = vpack.c.b16 %v732, %v731
    %v779 = vpack.c.b16 %v734, %v733
    %v780 = vpack.c.b16 %v736, %v735
    %v781 = vpack.c.b16 %v738, %v737
    %v782 = vpack.c.b16 %v740, %v739
    %v783 = vpack.c.b16 %v742, %v741
    %v784 = vpack.c.b16 %v744, %v743
    %825 = vmatprep.subr.bf16.mxu0 0
    %826 = vmatpush1.bf16.msra.mxu0 %v745
    %827 = vmatprep.subr.bf16.mxu0 0
    %828 = vmatpush1.bf16.msra.mxu0 %v746
    %829 = vmatprep.subr.bf16.mxu0 0
    %830 = vmatpush1.bf16.msra.mxu0 %v747
    %831 = vmatprep.subr.bf16.mxu0 0
    %832 = vmatpush1.bf16.msra.mxu0 %v748
    %833 = vmatprep.subr.bf16.mxu0 0
    %834 = vmatpush1.bf16.msra.mxu0 %v749
    %835 = vmatprep.subr.bf16.mxu0 0
    %836 = vmatpush1.bf16.msra.mxu0 %v750
    %837 = vmatprep.subr.bf16.mxu0 0
    %838 = vmatpush1.bf16.msra.mxu0 %v751
    %839 = vmatprep.subr.bf16.mxu0 0
    %840 = vmatpush1.bf16.msra.mxu0 %v752
    %841 = vmatprep.subr.bf16.mxu0 0
    %842 = vmatpush1.bf16.msra.mxu0 %v753
    %843 = vmatprep.subr.bf16.mxu0 0
    %844 = vmatpush1.bf16.msra.mxu0 %v754
    %845 = vmatprep.subr.bf16.mxu0 0
    %846 = vmatpush1.bf16.msra.mxu0 %v755
    %847 = vmatprep.subr.bf16.mxu0 0
    %848 = vmatpush1.bf16.msra.mxu0 %v756
    %849 = vmatprep.subr.bf16.mxu0 0
    %850 = vmatpush1.bf16.msra.mxu0 %v757
    %851 = vmatprep.subr.bf16.mxu0 0
    %852 = vmatpush1.bf16.msra.mxu0 %v758
    %853 = vmatprep.subr.bf16.mxu0 0
    %854 = vmatpush1.bf16.msra.mxu0 %v759
    %855 = vmatprep.subr.bf16.mxu0 0
    %856 = vmatpush1.bf16.msra.mxu0 %v760
    %857 = vmatprep.mubr.bf16.mxu0 %v479
    %858 = vmatmul.mubr.bf16.gmra.mrb[0].mxu0 %v478
    %v859 = vpop.f32.mrb[0].mxu0
    %v860 = vadd.f32 %v583, %v859
    %v861 = vpop.f32.mrb[0].mxu0
    %v862 = vpop.f32.mrb[0].mxu0
    %v863 = vadd.f32 %v583, %v862
    %v864 = vpop.f32.mrb[0].mxu0
    %865 = vmatprep.mubr.bf16.mxu0 %v484
    %866 = vmatmul.mubr.bf16.gmra.mrb[0].mxu0 %v483
    %v867 = vpop.f32.mrb[0].mxu0
    %v868 = vadd.f32 %v583, %v867
    %v869 = vpop.f32.mrb[0].mxu0
    %v870 = vpop.f32.mrb[0].mxu0
    %v871 = vadd.f32 %v583, %v870
    %v872 = vpop.f32.mrb[0].mxu0
    %873 = vmatprep.mubr.bf16.mxu0 %v489
    %874 = vmatmul.mubr.bf16.gmra.mrb[0].mxu0 %v488
    %v875 = vpop.f32.mrb[0].mxu0
    %v876 = vadd.f32 %v583, %v875
    %v877 = vpop.f32.mrb[0].mxu0
    %v878 = vpop.f32.mrb[0].mxu0
    %v879 = vadd.f32 %v583, %v878
    %v880 = vpop.f32.mrb[0].mxu0
    %881 = vmatprep.mubr.bf16.mxu0 %v494
    %882 = vmatmul.mubr.bf16.gmra.mrb[0].mxu0 %v493
    %v883 = vpop.f32.mrb[0].mxu0
    %v884 = vadd.f32 %v583, %v883
    %v885 = vpop.f32.mrb[0].mxu0
    %v886 = vpop.f32.mrb[0].mxu0
    %v887 = vadd.f32 %v583, %v886
    %v888 = vpop.f32.mrb[0].mxu0
    %889 = vdwg.mxu0
    %890 = vmatprep.subr.bf16.mxu0 0
    %891 = vmatpush1.bf16.msra.mxu0 %v761
    %892 = vmatprep.subr.bf16.mxu0 0
    %893 = vmatpush1.bf16.msra.mxu0 %v762
    %894 = vmatprep.subr.bf16.mxu0 0
    %895 = vmatpush1.bf16.msra.mxu0 %v763
    %896 = vmatprep.subr.bf16.mxu0 0
    %897 = vmatpush1.bf16.msra.mxu0 %v764
    %898 = vmatprep.subr.bf16.mxu0 0
    %899 = vmatpush1.bf16.msra.mxu0 %v765
    %900 = vmatprep.subr.bf16.mxu0 0
    %901 = vmatpush1.bf16.msra.mxu0 %v766
    %902 = vmatprep.subr.bf16.mxu0 0
    %903 = vmatpush1.bf16.msra.mxu0 %v767
    %904 = vmatprep.subr.bf16.mxu0 0
    %905 = vmatpush1.bf16.msra.mxu0 %v768
    %906 = vmatprep.subr.bf16.mxu0 0
    %907 = vmatpush1.bf16.msra.mxu0 %v769
    %908 = vmatprep.subr.bf16.mxu0 0
    %909 = vmatpush1.bf16.msra.mxu0 %v770
    %910 = vmatprep.subr.bf16.mxu0 0
    %911 = vmatpush1.bf16.msra.mxu0 %v771
    %912 = vmatprep.subr.bf16.mxu0 0
    %913 = vmatpush1.bf16.msra.mxu0 %v772
    %914 = vmatprep.subr.bf16.mxu0 0
    %915 = vmatpush1.bf16.msra.mxu0 %v773
    %916 = vmatprep.subr.bf16.mxu0 0
    %917 = vmatpush1.bf16.msra.mxu0 %v774
    %918 = vmatprep.subr.bf16.mxu0 0
    %919 = vmatpush1.bf16.msra.mxu0 %v775
    %920 = vmatprep.subr.bf16.mxu0 0
    %921 = vmatpush1.bf16.msra.mxu0 %v776
    %922 = vmatprep.mubr.bf16.mxu0 %v481
    %923 = vmatmul.mubr.bf16.gmra.mrb[0].mxu0 %v480
    %v924 = vpop.f32.mrb[0].mxu0
    %v925 = vadd.f32 %v860, %v924
    %v926 = vpop.f32.mrb[0].mxu0
    %v927 = vpop.f32.mrb[0].mxu0
    %v928 = vadd.f32 %v863, %v927
    %v929 = vpop.f32.mrb[0].mxu0
    %930 = vmatprep.mubr.bf16.mxu0 %v486
    %931 = vmatmul.mubr.bf16.gmra.mrb[0].mxu0 %v485
    %v932 = vpop.f32.mrb[0].mxu0
    %v933 = vadd.f32 %v868, %v932
    %v934 = vpop.f32.mrb[0].mxu0
    %v935 = vpop.f32.mrb[0].mxu0
    %v936 = vadd.f32 %v871, %v935
    %v937 = vpop.f32.mrb[0].mxu0
    %938 = vmatprep.mubr.bf16.mxu0 %v491
    %939 = vmatmul.mubr.bf16.gmra.mrb[0].mxu0 %v490
    %v940 = vpop.f32.mrb[0].mxu0
    %v941 = vadd.f32 %v876, %v940
    %v942 = vpop.f32.mrb[0].mxu0
    %v943 = vpop.f32.mrb[0].mxu0
    %v944 = vadd.f32 %v879, %v943
    %v945 = vpop.f32.mrb[0].mxu0
    %946 = vmatprep.mubr.bf16.mxu0 %v496
    %947 = vmatmul.mubr.bf16.gmra.mrb[0].mxu0 %v495
    %v948 = vpop.f32.mrb[0].mxu0
    %v949 = vadd.f32 %v884, %v948
    %v950 = vpop.f32.mrb[0].mxu0
    %v951 = vpop.f32.mrb[0].mxu0
    %v952 = vadd.f32 %v887, %v951
    %v953 = vpop.f32.mrb[0].mxu0
    %954 = vdwg.mxu0
    %955 = vmatprep.subr.bf16.mxu0 0
    %956 = vmatpush1.bf16.msra.mxu0 %v777
    %957 = vmatprep.subr.bf16.mxu0 0
    %958 = vmatpush1.bf16.msra.mxu0 %v778
    %959 = vmatprep.subr.bf16.mxu0 0
    %960 = vmatpush1.bf16.msra.mxu0 %v779
    %961 = vmatprep.subr.bf16.mxu0 0
    %962 = vmatpush1.bf16.msra.mxu0 %v780
    %963 = vmatprep.subr.bf16.mxu0 0
    %964 = vmatpush1.bf16.msra.mxu0 %v781
    %965 = vmatprep.subr.bf16.mxu0 0
    %966 = vmatpush1.bf16.msra.mxu0 %v782
    %967 = vmatprep.subr.bf16.mxu0 0
    %968 = vmatpush1.bf16.msra.mxu0 %v783
    %969 = vmatprep.subr.bf16.mxu0 0
    %970 = vmatpush1.bf16.msra.mxu0 %v784
    %971 = vmatprep.subr.bf16.mxu0 0
    %972 = vmatpush1.bf16.msra.mxu0 0
    %973 = vmatprep.subr.bf16.mxu0 0
    %974 = vmatpush1.bf16.msra.mxu0 0
    %975 = vmatprep.subr.bf16.mxu0 0
    %976 = vmatpush1.bf16.msra.mxu0 0
    %977 = vmatprep.subr.bf16.mxu0 0
    %978 = vmatpush1.bf16.msra.mxu0 0
    %979 = vmatprep.subr.bf16.mxu0 0
    %980 = vmatpush1.bf16.msra.mxu0 0
    %981 = vmatprep.subr.bf16.mxu0 0
    %982 = vmatpush1.bf16.msra.mxu0 0
    %983 = vmatprep.subr.bf16.mxu0 0
    %984 = vmatpush1.bf16.msra.mxu0 0
    %985 = vmatprep.subr.bf16.mxu0 0
    %986 = vmatpush1.bf16.msra.mxu0 0
    %987 = vmatprep.mubr.bf16.mxu0 0
    %988 = vmatmul.mubr.bf16.gmra.mrb[0].mxu0 %v482
    %v989 = vpop.f32.mrb[0].mxu0
    %v990 = vadd.f32 %v925, %v989
    %v991 = vpop.f32.mrb[0].mxu0
    %v992 = vpop.f32.mrb[0].mxu0
    %v993 = vadd.f32 %v928, %v992
    %v994 = vpop.f32.mrb[0].mxu0
    %995 = vmatprep.mubr.bf16.mxu0 0
    %996 = vmatmul.mubr.bf16.gmra.mrb[0].mxu0 %v487
    %v997 = vpop.f32.mrb[0].mxu0
    %v998 = vadd.f32 %v933, %v997
    %v999 = vpop.f32.mrb[0].mxu0
    %v1000 = vpop.f32.mrb[0].mxu0
    %v1001 = vadd.f32 %v936, %v1000
    %v1002 = vpop.f32.mrb[0].mxu0
    %1003 = vmatprep.mubr.bf16.mxu0 0
    %1004 = vmatmul.mubr.bf16.gmra.mrb[0].mxu0 %v492
    %v1005 = vpop.f32.mrb[0].mxu0
    %v1006 = vadd.f32 %v941, %v1005
    %v1007 = vpop.f32.mrb[0].mxu0
    %v1008 = vpop.f32.mrb[0].mxu0
    %v1009 = vadd.f32 %v944, %v1008
    %v1010 = vpop.f32.mrb[0].mxu0
    %1011 = vmatprep.mubr.bf16.mxu0 0
    %1012 = vmatmul.mubr.bf16.gmra.mrb[0].mxu0 %v497
    %v1013 = vpop.f32.mrb[0].mxu0
    %v1014 = vadd.f32 %v949, %v1013
    %v1015 = vpop.f32.mrb[0].mxu0
    %v1016 = vpop.f32.mrb[0].mxu0
    %v1017 = vadd.f32 %v952, %v1016
    %v1018 = vpop.f32.mrb[0].mxu0
    %1019 = vdwg.mxu0
    %v1020 = vmax.f32 %v990, 0.0
    %v1021 = vmax.f32 %v993, 0.0
    %v1022 = vmax.f32 %v998, 0.0
    %v1023 = vmax.f32 %v1001, 0.0
    %v1024 = vmax.f32 %v1006, 0.0
    %v1025 = vmax.f32 %v1009, 0.0
    %v1026 = vmax.f32 %v1014, 0.0
    %v1027 = vmax.f32 %v1017, 0.0
    %v1028 = vpack.c.bf16 %v1021, %v1020
    %v1029 = vpack.c.bf16 %v1023, %v1022
    %v1030 = vpack.c.bf16 %v1025, %v1024
    %v1031 = vpack.c.bf16 %v1027, %v1026
    %v1032 = vld [vmem:[%s4] sm:$0xf]
    %v1033 = vld [vmem:[%s4 + $0x4] sm:$0xf]
    %v1034 = vld [vmem:[%s4 + $0x8] sm:$0xf]
    %v1035 = vld [vmem:[%s4 + $0xc] sm:$0xf]
    %v1036 = vld [vmem:[%s4 + $0x10] sm:$0xf]
    %v1037 = vld [vmem:[%s4 + $0x14] sm:$0xf]
    %v1038 = vld [vmem:[%s4 + $0x18] sm:$0xf]
    %v1039 = vld [vmem:[%s4 + $0x1c] sm:$0xf]
    %v1040 = vld [vmem:[%s4 + $0x20] sm:$0xf]
    %v1041 = vld [vmem:[%s4 + $0x24] sm:$0xf]
    %v1042 = vld [vmem:[%s4 + $0x28] sm:$0xf]
    %v1043 = vld [vmem:[%s4 + $0x2c] sm:$0xf]
    %v1056 = vunpack.c.l.b16 %v1032
    %v1057 = vunpack.c.l.b16 %v1033
    %v1058 = vunpack.c.l.b16 %v1034
    %v1059 = vunpack.c.l.b16 %v1035
    %v1060 = vunpack.c.l.b16 %v1036
    %v1061 = vunpack.c.l.b16 %v1037
    %v1062 = vunpack.c.l.b16 %v1038
    %v1063 = vunpack.c.l.b16 %v1039
    %v1064 = vunpack.c.l.b16 %v1040
    %v1065 = vunpack.c.l.b16 %v1041
    %v1066 = vunpack.c.l.b16 %v1042
    %v1067 = vunpack.c.l.b16 %v1043
    %v1068 = vpack.c.b16 %v1057, %v1056
    %v1069 = vpack.c.b16 %v1059, %v1058
    %v1070 = vpack.c.b16 %v1061, %v1060
    %v1071 = vpack.c.b16 %v1063, %v1062
    %v1072 = vpack.c.b16 %v1065, %v1064
    %v1073 = vpack.c.b16 %v1067, %v1066
    %vm1074 = vcmask 523264
    %v1076 = vsel %vm1074, %v1068, 0
    %v1079 = vsel %vm1074, %v1069, 0
    %v1082 = vsel %vm1074, %v1070, 0
    %v1085 = vsel %vm1074, %v1071, 0
    %v1088 = vsel %vm1074, %v1072, 0
    %v1091 = vsel %vm1074, %v1073, 0
    %1093 = vmatprep.subr.bf16.mxu0 0
    %1094 = vmatpush1.bf16.msra.mxu0 %v1028
    %1095 = vmatprep.subr.bf16.mxu0 0
    %1096 = vmatpush1.bf16.msra.mxu0 %v1029
    %1097 = vmatprep.subr.bf16.mxu0 0
    %1098 = vmatpush1.bf16.msra.mxu0 %v1030
    %1099 = vmatprep.subr.bf16.mxu0 0
    %1100 = vmatpush1.bf16.msra.mxu0 %v1031
    %1101 = vmatprep.subr.bf16.mxu0 0
    %1102 = vmatpush1.bf16.msra.mxu0 0
    %1103 = vmatprep.subr.bf16.mxu0 0
    %1104 = vmatpush1.bf16.msra.mxu0 0
    %1105 = vmatprep.subr.bf16.mxu0 0
    %1106 = vmatpush1.bf16.msra.mxu0 0
    %1107 = vmatprep.subr.bf16.mxu0 0
    %1108 = vmatpush1.bf16.msra.mxu0 0
    %1109 = vmatprep.subr.bf16.mxu0 0
    %1110 = vmatpush1.bf16.msra.mxu0 0
    %1111 = vmatprep.subr.bf16.mxu0 0
    %1112 = vmatpush1.bf16.msra.mxu0 0
    %1113 = vmatprep.subr.bf16.mxu0 0
    %1114 = vmatpush1.bf16.msra.mxu0 0
    %1115 = vmatprep.subr.bf16.mxu0 0
    %1116 = vmatpush1.bf16.msra.mxu0 0
    %1117 = vmatprep.subr.bf16.mxu0 0
    %1118 = vmatpush1.bf16.msra.mxu0 0
    %1119 = vmatprep.subr.bf16.mxu0 0
    %1120 = vmatpush1.bf16.msra.mxu0 0
    %1121 = vmatprep.subr.bf16.mxu0 0
    %1122 = vmatpush1.bf16.msra.mxu0 0
    %1123 = vmatprep.subr.bf16.mxu0 0
    %1124 = vmatpush1.bf16.msra.mxu0 0
    %1125 = vmatprep.mubr.bf16.mxu0 0
    %1126 = vmatmul.mubr.bf16.gmra.mrb[0].mxu0 %v1076
    %v1127 = vpop.f32.mrb[0].mxu0
    %v1128 = vadd.f32 0.0, %v1127
    %v1129 = vpop.f32.mrb[0].mxu0
    %v1130 = vpop.f32.mrb[0].mxu0
    %v1131 = vadd.f32 0.0, %v1130
    %v1132 = vpop.f32.mrb[0].mxu0
    %1133 = vmatprep.mubr.bf16.mxu0 0
    %1134 = vmatmul.mubr.bf16.gmra.mrb[0].mxu0 %v1079
    %v1135 = vpop.f32.mrb[0].mxu0
    %v1136 = vadd.f32 0.0, %v1135
    %v1137 = vpop.f32.mrb[0].mxu0
    %v1138 = vpop.f32.mrb[0].mxu0
    %v1139 = vadd.f32 0.0, %v1138
    %v1140 = vpop.f32.mrb[0].mxu0
    %1141 = vmatprep.mubr.bf16.mxu0 0
    %1142 = vmatmul.mubr.bf16.gmra.mrb[0].mxu0 %v1082
    %v1143 = vpop.f32.mrb[0].mxu0
    %v1144 = vadd.f32 0.0, %v1143
    %v1145 = vpop.f32.mrb[0].mxu0
    %v1146 = vpop.f32.mrb[0].mxu0
    %v1147 = vadd.f32 0.0, %v1146
    %v1148 = vpop.f32.mrb[0].mxu0
    %1149 = vmatprep.mubr.bf16.mxu0 0
    %1150 = vmatmul.mubr.bf16.gmra.mrb[0].mxu0 %v1085
    %v1151 = vpop.f32.mrb[0].mxu0
    %v1152 = vadd.f32 0.0, %v1151
    %v1153 = vpop.f32.mrb[0].mxu0
    %v1154 = vpop.f32.mrb[0].mxu0
    %v1155 = vadd.f32 0.0, %v1154
    %v1156 = vpop.f32.mrb[0].mxu0
    %1157 = vmatprep.mubr.bf16.mxu0 0
    %1158 = vmatmul.mubr.bf16.gmra.mrb[0].mxu0 %v1088
    %v1159 = vpop.f32.mrb[0].mxu0
    %v1160 = vadd.f32 0.0, %v1159
    %v1161 = vpop.f32.mrb[0].mxu0
    %v1162 = vpop.f32.mrb[0].mxu0
    %v1163 = vadd.f32 0.0, %v1162
    %v1164 = vpop.f32.mrb[0].mxu0
    %1165 = vmatprep.mubr.bf16.mxu0 0
    %1166 = vmatmul.mubr.bf16.gmra.mrb[0].mxu0 %v1091
    %v1167 = vpop.f32.mrb[0].mxu0
    %v1168 = vadd.f32 0.0, %v1167
    %v1169 = vpop.f32.mrb[0].mxu0
    %v1170 = vpop.f32.mrb[0].mxu0
    %v1171 = vadd.f32 0.0, %v1170
    %v1172 = vpop.f32.mrb[0].mxu0
    %1173 = vdwg.mxu0
    %v1174 = vpack.c.bf16 %v1131, %v1128
    %v1175 = vpack.c.bf16 %v1147, %v1144
    %v1176 = vpack.c.bf16 %v1163, %v1160
    %v1177 = vpack.c.bf16 %v1139, %v1136
    %v1178 = vpack.c.bf16 %v1155, %v1152
    %v1179 = vpack.c.bf16 %v1171, %v1168
    %v1180 = vld [vmem:[%s5] sm:$0xf]
    %v1181 = vld [vmem:[%s5 + $0x4] sm:$0xf]
    %v1182 = vld [vmem:[%s5 + $0x8] sm:$0xf]
    %v1183 = vld [vmem:[%s5 + $0xc] sm:$0xf]
    %v1184 = vld [vmem:[%s5 + $0x10] sm:$0xf]
    %v1185 = vld [vmem:[%s5 + $0x14] sm:$0xf]
    %v1186 = vld [vmem:[%s5 + $0x18] sm:$0xf]
    %v1187 = vld [vmem:[%s5 + $0x1c] sm:$0xf]
    %v1188 = vld [vmem:[%s5 + $0x20] sm:$0xf]
    %v1189 = vld [vmem:[%s5 + $0x24] sm:$0xf]
    %v1190 = vld [vmem:[%s5 + $0x28] sm:$0xf]
    %v1191 = vld [vmem:[%s5 + $0x2c] sm:$0xf]
    %v1192 = vld [vmem:[%s5 + $0x30] sm:$0xf]
    %v1193 = vld [vmem:[%s5 + $0x34] sm:$0xf]
    %v1194 = vld [vmem:[%s5 + $0x38] sm:$0xf]
    %v1195 = vld [vmem:[%s5 + $0x3c] sm:$0xf]
    %v1196 = vld [vmem:[%s5 + $0x40] sm:$0xf]
    %v1197 = vld [vmem:[%s5 + $0x44] sm:$0xf]
    %v1198 = vld [vmem:[%s5 + $0x48] sm:$0xf]
    %v1199 = vld [vmem:[%s5 + $0x4c] sm:$0xf]
    %v1200 = vld [vmem:[%s5 + $0x50] sm:$0xf]
    %v1201 = vld [vmem:[%s5 + $0x54] sm:$0xf]
    %v1202 = vld [vmem:[%s5 + $0x58] sm:$0xf]
    %v1203 = vld [vmem:[%s5 + $0x5c] sm:$0xf]
    %v1204 = vld [vmem:[%s5 + $0x60] sm:$0xf]
    %v1205 = vld [vmem:[%s5 + $0x64] sm:$0xf]
    %v1206 = vld [vmem:[%s5 + $0x68] sm:$0xf]
    %v1207 = vld [vmem:[%s5 + $0x6c] sm:$0xf]
    %v1208 = vld [vmem:[%s5 + $0x70] sm:$0xf]
    %v1209 = vld [vmem:[%s5 + $0x74] sm:$0xf]
    %v1210 = vld [vmem:[%s5 + $0x78] sm:$0xf]
    %v1211 = vld [vmem:[%s5 + $0x7c] sm:$0xf]
    %v1212 = vld [vmem:[%s5 + $0x80] sm:$0xf]
    %v1213 = vld [vmem:[%s5 + $0x84] sm:$0xf]
    %v1214 = vld [vmem:[%s5 + $0x88] sm:$0xf]
    %v1215 = vld [vmem:[%s5 + $0x8c] sm:$0xf]
    %v1216 = vld [vmem:[%s5 + $0x90] sm:$0xf]
    %v1217 = vld [vmem:[%s5 + $0x94] sm:$0xf]
    %v1218 = vld [vmem:[%s5 + $0x98] sm:$0xf]
    %v1219 = vld [vmem:[%s5 + $0x9c] sm:$0xf]
    %v1220 = vld [vmem:[%s5 + $0xa0] sm:$0xf]
    %v1221 = vld [vmem:[%s5 + $0xa4] sm:$0xf]
    %v1222 = vld [vmem:[%s5 + $0xa8] sm:$0xf]
    %v1223 = vld [vmem:[%s5 + $0xac] sm:$0xf]
    %v1224 = vld [vmem:[%s5 + $0xb0] sm:$0xf]
    %v1225 = vld [vmem:[%s5 + $0xb4] sm:$0xf]
    %v1226 = vld [vmem:[%s5 + $0xb8] sm:$0xf]
    %v1227 = vld [vmem:[%s5 + $0xbc] sm:$0xf]
    %v1228 = vld [vmem:[%s6] sm:$0x1]
    %v1230 = vlaneseq
    %v1231 = vshrl.u32 %v1230, 7
    %v1232 = vsub.s32 0, %v1231
    %v1233 = vrot.slane %v1228, %v1232
    %v1283 = vunpack.c.l.b16 %v1180
    %v1284 = vunpack.c.l.b16 %v1181
    %v1285 = vunpack.c.l.b16 %v1182
    %v1286 = vunpack.c.l.b16 %v1183
    %v1287 = vunpack.c.l.b16 %v1184
    %v1288 = vunpack.c.l.b16 %v1185
    %v1289 = vunpack.c.l.b16 %v1186
    %v1290 = vunpack.c.l.b16 %v1187
    %v1291 = vunpack.c.l.b16 %v1188
    %v1292 = vunpack.c.l.b16 %v1189
    %v1293 = vunpack.c.l.b16 %v1190
    %v1294 = vunpack.c.l.b16 %v1191
    %v1295 = vunpack.c.l.b16 %v1192
    %v1296 = vunpack.c.l.b16 %v1193
    %v1297 = vunpack.c.l.b16 %v1194
    %v1298 = vunpack.c.l.b16 %v1195
    %v1299 = vunpack.c.l.b16 %v1196
    %v1300 = vunpack.c.l.b16 %v1197
    %v1301 = vunpack.c.l.b16 %v1198
    %v1302 = vunpack.c.l.b16 %v1199
    %v1303 = vunpack.c.l.b16 %v1200
    %v1304 = vunpack.c.l.b16 %v1201
    %v1305 = vunpack.c.l.b16 %v1202
    %v1306 = vunpack.c.l.b16 %v1203
    %v1307 = vunpack.c.l.b16 %v1204
    %v1308 = vunpack.c.l.b16 %v1205
    %v1309 = vunpack.c.l.b16 %v1206
    %v1310 = vunpack.c.l.b16 %v1207
    %v1311 = vunpack.c.l.b16 %v1208
    %v1312 = vunpack.c.l.b16 %v1209
    %v1313 = vunpack.c.l.b16 %v1210
    %v1314 = vunpack.c.l.b16 %v1211
    %v1315 = vunpack.c.l.b16 %v1212
    %v1316 = vunpack.c.l.b16 %v1213
    %v1317 = vunpack.c.l.b16 %v1214
    %v1318 = vunpack.c.l.b16 %v1215
    %v1319 = vunpack.c.l.b16 %v1216
    %v1320 = vunpack.c.l.b16 %v1217
    %v1321 = vunpack.c.l.b16 %v1218
    %v1322 = vunpack.c.l.b16 %v1219
    %v1323 = vunpack.c.l.b16 %v1220
    %v1324 = vunpack.c.l.b16 %v1221
    %v1325 = vunpack.c.l.b16 %v1222
    %v1326 = vunpack.c.l.b16 %v1223
    %v1327 = vunpack.c.l.b16 %v1224
    %v1328 = vunpack.c.l.b16 %v1225
    %v1329 = vunpack.c.l.b16 %v1226
    %v1330 = vunpack.c.l.b16 %v1227
    %v1331 = vpack.c.b16 %v1284, %v1283
    %v1332 = vpack.c.b16 %v1286, %v1285
    %v1333 = vpack.c.b16 %v1288, %v1287
    %v1334 = vpack.c.b16 %v1290, %v1289
    %v1335 = vpack.c.b16 %v1292, %v1291
    %v1336 = vpack.c.b16 %v1294, %v1293
    %v1337 = vpack.c.b16 %v1296, %v1295
    %v1338 = vpack.c.b16 %v1298, %v1297
    %v1339 = vpack.c.b16 %v1300, %v1299
    %v1340 = vpack.c.b16 %v1302, %v1301
    %v1341 = vpack.c.b16 %v1304, %v1303
    %v1342 = vpack.c.b16 %v1306, %v1305
    %v1343 = vpack.c.b16 %v1308, %v1307
    %v1344 = vpack.c.b16 %v1310, %v1309
    %v1345 = vpack.c.b16 %v1312, %v1311
    %v1346 = vpack.c.b16 %v1314, %v1313
    %v1347 = vpack.c.b16 %v1316, %v1315
    %v1348 = vpack.c.b16 %v1318, %v1317
    %v1349 = vpack.c.b16 %v1320, %v1319
    %v1350 = vpack.c.b16 %v1322, %v1321
    %v1351 = vpack.c.b16 %v1324, %v1323
    %v1352 = vpack.c.b16 %v1326, %v1325
    %v1353 = vpack.c.b16 %v1328, %v1327
    %v1354 = vpack.c.b16 %v1330, %v1329
    %1379 = vmatprep.subr.bf16.mxu0 0
    %1380 = vmatpush1.bf16.msra.mxu0 %v1331
    %1381 = vmatprep.subr.bf16.mxu0 0
    %1382 = vmatpush1.bf16.msra.mxu0 %v1332
    %1383 = vmatprep.subr.bf16.mxu0 0
    %1384 = vmatpush1.bf16.msra.mxu0 %v1333
    %1385 = vmatprep.subr.bf16.mxu0 0
    %1386 = vmatpush1.bf16.msra.mxu0 %v1334
    %1387 = vmatprep.subr.bf16.mxu0 0
    %1388 = vmatpush1.bf16.msra.mxu0 %v1335
    %1389 = vmatprep.subr.bf16.mxu0 0
    %1390 = vmatpush1.bf16.msra.mxu0 %v1336
    %1391 = vmatprep.subr.bf16.mxu0 0
    %1392 = vmatpush1.bf16.msra.mxu0 %v1337
    %1393 = vmatprep.subr.bf16.mxu0 0
    %1394 = vmatpush1.bf16.msra.mxu0 %v1338
    %1395 = vmatprep.subr.bf16.mxu0 0
    %1396 = vmatpush1.bf16.msra.mxu0 %v1339
    %1397 = vmatprep.subr.bf16.mxu0 0
    %1398 = vmatpush1.bf16.msra.mxu0 %v1340
    %1399 = vmatprep.subr.bf16.mxu0 0
    %1400 = vmatpush1.bf16.msra.mxu0 %v1341
    %1401 = vmatprep.subr.bf16.mxu0 0
    %1402 = vmatpush1.bf16.msra.mxu0 %v1342
    %1403 = vmatprep.subr.bf16.mxu0 0
    %1404 = vmatpush1.bf16.msra.mxu0 %v1343
    %1405 = vmatprep.subr.bf16.mxu0 0
    %1406 = vmatpush1.bf16.msra.mxu0 %v1344
    %1407 = vmatprep.subr.bf16.mxu0 0
    %1408 = vmatpush1.bf16.msra.mxu0 %v1345
    %1409 = vmatprep.subr.bf16.mxu0 0
    %1410 = vmatpush1.bf16.msra.mxu0 %v1346
    %1411 = vmatprep.mubr.bf16.mxu0 %v1175
    %1412 = vmatmul.mubr.bf16.gmra.mrb[0].mxu0 %v1174
    %v1413 = vpop.f32.mrb[0].mxu0
    %v1414 = vadd.f32 %v1233, %v1413
    %v1415 = vpop.f32.mrb[0].mxu0
    %v1416 = vpop.f32.mrb[0].mxu0
    %v1417 = vadd.f32 %v1233, %v1416
    %v1418 = vpop.f32.mrb[0].mxu0
    %1419 = vmatprep.mubr.bf16.mxu0 %v1178
    %1420 = vmatmul.mubr.bf16.gmra.mrb[0].mxu0 %v1177
    %v1421 = vpop.f32.mrb[0].mxu0
    %v1422 = vadd.f32 %v1233, %v1421
    %v1423 = vpop.f32.mrb[0].mxu0
    %v1424 = vpop.f32.mrb[0].mxu0
    %v1425 = vadd.f32 %v1233, %v1424
    %v1426 = vpop.f32.mrb[0].mxu0
    %1427 = vdwg.mxu0
    %1428 = vmatprep.subr.bf16.mxu0 0
    %1429 = vmatpush1.bf16.msra.mxu0 %v1347
    %1430 = vmatprep.subr.bf16.mxu0 0
    %1431 = vmatpush1.bf16.msra.mxu0 %v1348
    %1432 = vmatprep.subr.bf16.mxu0 0
    %1433 = vmatpush1.bf16.msra.mxu0 %v1349
    %1434 = vmatprep.subr.bf16.mxu0 0
    %1435 = vmatpush1.bf16.msra.mxu0 %v1350
    %1436 = vmatprep.subr.bf16.mxu0 0
    %1437 = vmatpush1.bf16.msra.mxu0 %v1351
    %1438 = vmatprep.subr.bf16.mxu0 0
    %1439 = vmatpush1.bf16.msra.mxu0 %v1352
    %1440 = vmatprep.subr.bf16.mxu0 0
    %1441 = vmatpush1.bf16.msra.mxu0 %v1353
    %1442 = vmatprep.subr.bf16.mxu0 0
    %1443 = vmatpush1.bf16.msra.mxu0 %v1354
    %1444 = vmatprep.subr.bf16.mxu0 0
    %1445 = vmatpush1.bf16.msra.mxu0 0
    %1446 = vmatprep.subr.bf16.mxu0 0
    %1447 = vmatpush1.bf16.msra.mxu0 0
    %1448 = vmatprep.subr.bf16.mxu0 0
    %1449 = vmatpush1.bf16.msra.mxu0 0
    %1450 = vmatprep.subr.bf16.mxu0 0
    %1451 = vmatpush1.bf16.msra.mxu0 0
    %1452 = vmatprep.subr.bf16.mxu0 0
    %1453 = vmatpush1.bf16.msra.mxu0 0
    %1454 = vmatprep.subr.bf16.mxu0 0
    %1455 = vmatpush1.bf16.msra.mxu0 0
    %1456 = vmatprep.subr.bf16.mxu0 0
    %1457 = vmatpush1.bf16.msra.mxu0 0
    %1458 = vmatprep.subr.bf16.mxu0 0
    %1459 = vmatpush1.bf16.msra.mxu0 0
    %1460 = vmatprep.mubr.bf16.mxu0 0
    %1461 = vmatmul.mubr.bf16.gmra.mrb[0].mxu0 %v1176
    %v1462 = vpop.f32.mrb[0].mxu0
    %v1463 = vadd.f32 %v1414, %v1462
    %v1464 = vpop.f32.mrb[0].mxu0
    %v1465 = vpop.f32.mrb[0].mxu0
    %v1466 = vadd.f32 %v1417, %v1465
    %v1467 = vpop.f32.mrb[0].mxu0
    %1468 = vmatprep.mubr.bf16.mxu0 0
    %1469 = vmatmul.mubr.bf16.gmra.mrb[0].mxu0 %v1179
    %v1470 = vpop.f32.mrb[0].mxu0
    %v1471 = vadd.f32 %v1422, %v1470
    %v1472 = vpop.f32.mrb[0].mxu0
    %v1473 = vpop.f32.mrb[0].mxu0
    %v1474 = vadd.f32 %v1425, %v1473
    %v1475 = vpop.f32.mrb[0].mxu0
    %1476 = vdwg.mxu0
    %v1477 = vmax.f32 %v1463, 0.0
    %v1478 = vmax.f32 %v1466, 0.0
    %v1479 = vmax.f32 %v1471, 0.0
    %v1480 = vmax.f32 %v1474, 0.0
    %v1481 = vpack.c.bf16 %v1478, %v1477
    %v1482 = vpack.c.bf16 %v1480, %v1479
    %v1483 = vld [vmem:[%s7] sm:$0xf]
    %v1484 = vld [vmem:[%s7 + $0x4] sm:$0xf]
    %v1485 = vld [vmem:[%s7 + $0x8] sm:$0xf]
    %v1486 = vld [vmem:[%s7 + $0xc] sm:$0xf]
    %v1487 = vld [vmem:[%s7 + $0x10] sm:$0xf]
    %v1488 = vld [vmem:[%s7 + $0x14] sm:$0xf]
    %v1495 = vunpack.c.l.b16 %v1483
    %v1496 = vunpack.c.l.b16 %v1484
    %v1497 = vunpack.c.l.b16 %v1485
    %v1498 = vunpack.c.l.b16 %v1486
    %v1499 = vunpack.c.l.b16 %v1487
    %v1500 = vunpack.c.l.b16 %v1488
    %v1501 = vpack.c.b16 %v1496, %v1495
    %v1502 = vpack.c.b16 %v1498, %v1497
    %v1503 = vpack.c.b16 %v1500, %v1499
    %vm1504 = vcmask 261120
    %v1506 = vsel %vm1504, %v1501, 0
    %v1509 = vsel %vm1504, %v1502, 0
    %v1512 = vsel %vm1504, %v1503, 0
    %1514 = vmatprep.subr.bf16.mxu0 0
    %1515 = vmatpush1.bf16.msra.mxu0 %v1481
    %1516 = vmatprep.subr.bf16.mxu0 0
    %1517 = vmatpush1.bf16.msra.mxu0 %v1482
    %1518 = vmatprep.subr.bf16.mxu0 0
    %1519 = vmatpush1.bf16.msra.mxu0 0
    %1520 = vmatprep.subr.bf16.mxu0 0
    %1521 = vmatpush1.bf16.msra.mxu0 0
    %1522 = vmatprep.subr.bf16.mxu0 0
    %1523 = vmatpush1.bf16.msra.mxu0 0
    %1524 = vmatprep.subr.bf16.mxu0 0
    %1525 = vmatpush1.bf16.msra.mxu0 0
    %1526 = vmatprep.subr.bf16.mxu0 0
    %1527 = vmatpush1.bf16.msra.mxu0 0
    %1528 = vmatprep.subr.bf16.mxu0 0
    %1529 = vmatpush1.bf16.msra.mxu0 0
    %1530 = vmatprep.subr.bf16.mxu0 0
    %1531 = vmatpush1.bf16.msra.mxu0 0
    %1532 = vmatprep.subr.bf16.mxu0 0
    %1533 = vmatpush1.bf16.msra.mxu0 0
    %1534 = vmatprep.subr.bf16.mxu0 0
    %1535 = vmatpush1.bf16.msra.mxu0 0
    %1536 = vmatprep.subr.bf16.mxu0 0
    %1537 = vmatpush1.bf16.msra.mxu0 0
    %1538 = vmatprep.subr.bf16.mxu0 0
    %1539 = vmatpush1.bf16.msra.mxu0 0
    %1540 = vmatprep.subr.bf16.mxu0 0
    %1541 = vmatpush1.bf16.msra.mxu0 0
    %1542 = vmatprep.subr.bf16.mxu0 0
    %1543 = vmatpush1.bf16.msra.mxu0 0
    %1544 = vmatprep.subr.bf16.mxu0 0
    %1545 = vmatpush1.bf16.msra.mxu0 0
    %1546 = vmatprep.mubr.bf16.mxu0 0
    %1547 = vmatmul.mubr.bf16.gmra.mrb[0].mxu0 %v1506
    %v1548 = vpop.f32.mrb[0].mxu0
    %v1549 = vadd.f32 0.0, %v1548
    %v1550 = vpop.f32.mrb[0].mxu0
    %v1551 = vpop.f32.mrb[0].mxu0
    %v1552 = vadd.f32 0.0, %v1551
    %v1553 = vpop.f32.mrb[0].mxu0
    %1554 = vmatprep.mubr.bf16.mxu0 0
    %1555 = vmatmul.mubr.bf16.gmra.mrb[0].mxu0 %v1509
    %v1556 = vpop.f32.mrb[0].mxu0
    %v1557 = vadd.f32 0.0, %v1556
    %v1558 = vpop.f32.mrb[0].mxu0
    %v1559 = vpop.f32.mrb[0].mxu0
    %v1560 = vadd.f32 0.0, %v1559
    %v1561 = vpop.f32.mrb[0].mxu0
    %1562 = vmatprep.mubr.bf16.mxu0 0
    %1563 = vmatmul.mubr.bf16.gmra.mrb[0].mxu0 %v1512
    %v1564 = vpop.f32.mrb[0].mxu0
    %v1565 = vadd.f32 0.0, %v1564
    %v1566 = vpop.f32.mrb[0].mxu0
    %v1567 = vpop.f32.mrb[0].mxu0
    %v1568 = vadd.f32 0.0, %v1567
    %v1569 = vpop.f32.mrb[0].mxu0
    %1570 = vdwg.mxu0
    %v1571 = vpack.c.bf16 %v1552, %v1549
    %v1572 = vpack.c.bf16 %v1560, %v1557
    %v1573 = vpack.c.bf16 %v1568, %v1565
    %v1574 = vld [vmem:[%s8] sm:$0xf]
    %v1575 = vld [vmem:[%s8 + $0x4] sm:$0xf]
    %v1576 = vld [vmem:[%s8 + $0x8] sm:$0xf]
    %v1577 = vld [vmem:[%s8 + $0xc] sm:$0xf]
    %v1578 = vld [vmem:[%s8 + $0x10] sm:$0xf]
    %v1579 = vld [vmem:[%s8 + $0x14] sm:$0xf]
    %v1580 = vld [vmem:[%s8 + $0x18] sm:$0xf]
    %v1581 = vld [vmem:[%s8 + $0x1c] sm:$0xf]
    %v1582 = vld [vmem:[%s8 + $0x20] sm:$0xf]
    %v1583 = vld [vmem:[%s8 + $0x24] sm:$0xf]
    %v1584 = vld [vmem:[%s8 + $0x28] sm:$0xf]
    %v1585 = vld [vmem:[%s8 + $0x2c] sm:$0xf]
    %v1586 = vld [vmem:[%s8 + $0x30] sm:$0xf]
    %v1587 = vld [vmem:[%s8 + $0x34] sm:$0xf]
    %v1588 = vld [vmem:[%s8 + $0x38] sm:$0xf]
    %v1589 = vld [vmem:[%s8 + $0x3c] sm:$0xf]
    %v1590 = vld [vmem:[%s8 + $0x40] sm:$0xf]
    %v1591 = vld [vmem:[%s8 + $0x44] sm:$0xf]
    %v1592 = vld [vmem:[%s8 + $0x48] sm:$0xf]
    %v1593 = vld [vmem:[%s8 + $0x4c] sm:$0xf]
    %v1594 = vld [vmem:[%s8 + $0x50] sm:$0xf]
    %v1595 = vld [vmem:[%s8 + $0x54] sm:$0xf]
    %v1596 = vld [vmem:[%s8 + $0x58] sm:$0xf]
    %v1597 = vld [vmem:[%s8 + $0x5c] sm:$0xf]
    %v1598 = vld [vmem:[%s8 + $0x60] sm:$0xf]
    %v1599 = vld [vmem:[%s8 + $0x64] sm:$0xf]
    %v1600 = vld [vmem:[%s8 + $0x68] sm:$0xf]
    %v1601 = vld [vmem:[%s8 + $0x6c] sm:$0xf]
    %v1602 = vld [vmem:[%s8 + $0x70] sm:$0xf]
    %v1603 = vld [vmem:[%s8 + $0x74] sm:$0xf]
    %v1604 = vld [vmem:[%s8 + $0x78] sm:$0xf]
    %v1605 = vld [vmem:[%s8 + $0x7c] sm:$0xf]
    %v1606 = vld [vmem:[%s8 + $0x80] sm:$0xf]
    %v1607 = vld [vmem:[%s8 + $0x84] sm:$0xf]
    %v1608 = vld [vmem:[%s8 + $0x88] sm:$0xf]
    %v1609 = vld [vmem:[%s8 + $0x8c] sm:$0xf]
    %v1610 = vld [vmem:[%s8 + $0x90] sm:$0xf]
    %v1611 = vld [vmem:[%s8 + $0x94] sm:$0xf]
    %v1612 = vld [vmem:[%s8 + $0x98] sm:$0xf]
    %v1613 = vld [vmem:[%s8 + $0x9c] sm:$0xf]
    %v1614 = vld [vmem:[%s8 + $0xa0] sm:$0xf]
    %v1615 = vld [vmem:[%s8 + $0xa4] sm:$0xf]
    %v1616 = vld [vmem:[%s8 + $0xa8] sm:$0xf]
    %v1617 = vld [vmem:[%s8 + $0xac] sm:$0xf]
    %v1618 = vld [vmem:[%s8 + $0xb0] sm:$0xf]
    %v1619 = vld [vmem:[%s8 + $0xb4] sm:$0xf]
    %v1620 = vld [vmem:[%s8 + $0xb8] sm:$0xf]
    %v1621 = vld [vmem:[%s8 + $0xbc] sm:$0xf]
    %v1622 = vld [vmem:[%s9] sm:$0x1]
    %v1624 = vlaneseq
    %v1625 = vshrl.u32 %v1624, 7
    %v1626 = vsub.s32 0, %v1625
    %v1627 = vrot.slane %v1622, %v1626
    %v1677 = vunpack.c.l.b16 %v1574
    %v1678 = vunpack.c.l.b16 %v1575
    %v1679 = vunpack.c.l.b16 %v1576
    %v1680 = vunpack.c.l.b16 %v1577
    %v1681 = vunpack.c.l.b16 %v1578
    %v1682 = vunpack.c.l.b16 %v1579
    %v1683 = vunpack.c.l.b16 %v1580
    %v1684 = vunpack.c.l.b16 %v1581
    %v1685 = vunpack.c.l.b16 %v1582
    %v1686 = vunpack.c.l.b16 %v1583
    %v1687 = vunpack.c.l.b16 %v1584
    %v1688 = vunpack.c.l.b16 %v1585
    %v1689 = vunpack.c.l.b16 %v1586
    %v1690 = vunpack.c.l.b16 %v1587
    %v1691 = vunpack.c.l.b16 %v1588
    %v1692 = vunpack.c.l.b16 %v1589
    %v1693 = vunpack.c.l.b16 %v1590
    %v1694 = vunpack.c.l.b16 %v1591
    %v1695 = vunpack.c.l.b16 %v1592
    %v1696 = vunpack.c.l.b16 %v1593
    %v1697 = vunpack.c.l.b16 %v1594
    %v1698 = vunpack.c.l.b16 %v1595
    %v1699 = vunpack.c.l.b16 %v1596
    %v1700 = vunpack.c.l.b16 %v1597
    %v1701 = vunpack.c.l.b16 %v1598
    %v1702 = vunpack.c.l.b16 %v1599
    %v1703 = vunpack.c.l.b16 %v1600
    %v1704 = vunpack.c.l.b16 %v1601
    %v1705 = vunpack.c.l.b16 %v1602
    %v1706 = vunpack.c.l.b16 %v1603
    %v1707 = vunpack.c.l.b16 %v1604
    %v1708 = vunpack.c.l.b16 %v1605
    %v1709 = vunpack.c.l.b16 %v1606
    %v1710 = vunpack.c.l.b16 %v1607
    %v1711 = vunpack.c.l.b16 %v1608
    %v1712 = vunpack.c.l.b16 %v1609
    %v1713 = vunpack.c.l.b16 %v1610
    %v1714 = vunpack.c.l.b16 %v1611
    %v1715 = vunpack.c.l.b16 %v1612
    %v1716 = vunpack.c.l.b16 %v1613
    %v1717 = vunpack.c.l.b16 %v1614
    %v1718 = vunpack.c.l.b16 %v1615
    %v1719 = vunpack.c.l.b16 %v1616
    %v1720 = vunpack.c.l.b16 %v1617
    %v1721 = vunpack.c.l.b16 %v1618
    %v1722 = vunpack.c.l.b16 %v1619
    %v1723 = vunpack.c.l.b16 %v1620
    %v1724 = vunpack.c.l.b16 %v1621
    %v1725 = vpack.c.b16 %v1678, %v1677
    %v1726 = vpack.c.b16 %v1680, %v1679
    %v1727 = vpack.c.b16 %v1682, %v1681
    %v1728 = vpack.c.b16 %v1684, %v1683
    %v1729 = vpack.c.b16 %v1686, %v1685
    %v1730 = vpack.c.b16 %v1688, %v1687
    %v1731 = vpack.c.b16 %v1690, %v1689
    %v1732 = vpack.c.b16 %v1692, %v1691
    %v1733 = vpack.c.b16 %v1694, %v1693
    %v1734 = vpack.c.b16 %v1696, %v1695
    %v1735 = vpack.c.b16 %v1698, %v1697
    %v1736 = vpack.c.b16 %v1700, %v1699
    %v1737 = vpack.c.b16 %v1702, %v1701
    %v1738 = vpack.c.b16 %v1704, %v1703
    %v1739 = vpack.c.b16 %v1706, %v1705
    %v1740 = vpack.c.b16 %v1708, %v1707
    %v1741 = vpack.c.b16 %v1710, %v1709
    %v1742 = vpack.c.b16 %v1712, %v1711
    %v1743 = vpack.c.b16 %v1714, %v1713
    %v1744 = vpack.c.b16 %v1716, %v1715
    %v1745 = vpack.c.b16 %v1718, %v1717
    %v1746 = vpack.c.b16 %v1720, %v1719
    %v1747 = vpack.c.b16 %v1722, %v1721
    %v1748 = vpack.c.b16 %v1724, %v1723
    %1773 = vmatprep.subr.bf16.mxu0 0
    %1774 = vmatpush1.bf16.msra.mxu0 %v1725
    %1775 = vmatprep.subr.bf16.mxu0 0
    %1776 = vmatpush1.bf16.msra.mxu0 %v1726
    %1777 = vmatprep.subr.bf16.mxu0 0
    %1778 = vmatpush1.bf16.msra.mxu0 %v1727
    %1779 = vmatprep.subr.bf16.mxu0 0
    %1780 = vmatpush1.bf16.msra.mxu0 %v1728
    %1781 = vmatprep.subr.bf16.mxu0 0
    %1782 = vmatpush1.bf16.msra.mxu0 %v1729
    %1783 = vmatprep.subr.bf16.mxu0 0
    %1784 = vmatpush1.bf16.msra.mxu0 %v1730
    %1785 = vmatprep.subr.bf16.mxu0 0
    %1786 = vmatpush1.bf16.msra.mxu0 %v1731
    %1787 = vmatprep.subr.bf16.mxu0 0
    %1788 = vmatpush1.bf16.msra.mxu0 %v1732
    %1789 = vmatprep.subr.bf16.mxu0 0
    %1790 = vmatpush1.bf16.msra.mxu0 %v1733
    %1791 = vmatprep.subr.bf16.mxu0 0
    %1792 = vmatpush1.bf16.msra.mxu0 %v1734
    %1793 = vmatprep.subr.bf16.mxu0 0
    %1794 = vmatpush1.bf16.msra.mxu0 %v1735
    %1795 = vmatprep.subr.bf16.mxu0 0
    %1796 = vmatpush1.bf16.msra.mxu0 %v1736
    %1797 = vmatprep.subr.bf16.mxu0 0
    %1798 = vmatpush1.bf16.msra.mxu0 %v1737
    %1799 = vmatprep.subr.bf16.mxu0 0
    %1800 = vmatpush1.bf16.msra.mxu0 %v1738
    %1801 = vmatprep.subr.bf16.mxu0 0
    %1802 = vmatpush1.bf16.msra.mxu0 %v1739
    %1803 = vmatprep.subr.bf16.mxu0 0
    %1804 = vmatpush1.bf16.msra.mxu0 %v1740
    %1805 = vmatprep.mubr.bf16.mxu0 %v1572
    %1806 = vmatmul.mubr.bf16.gmra.mrb[0].mxu0 %v1571
    %v1807 = vpop.f32.mrb[0].mxu0
    %v1808 = vadd.f32 %v1627, %v1807
    %v1809 = vpop.f32.mrb[0].mxu0
    %v1810 = vpop.f32.mrb[0].mxu0
    %v1811 = vadd.f32 %v1627, %v1810
    %v1812 = vpop.f32.mrb[0].mxu0
    %1813 = vdwg.mxu0
    %1814 = vmatprep.subr.bf16.mxu0 0
    %1815 = vmatpush1.bf16.msra.mxu0 %v1741
    %1816 = vmatprep.subr.bf16.mxu0 0
    %1817 = vmatpush1.bf16.msra.mxu0 %v1742
    %1818 = vmatprep.subr.bf16.mxu0 0
    %1819 = vmatpush1.bf16.msra.mxu0 %v1743
    %1820 = vmatprep.subr.bf16.mxu0 0
    %1821 = vmatpush1.bf16.msra.mxu0 %v1744
    %1822 = vmatprep.subr.bf16.mxu0 0
    %1823 = vmatpush1.bf16.msra.mxu0 %v1745
    %1824 = vmatprep.subr.bf16.mxu0 0
    %1825 = vmatpush1.bf16.msra.mxu0 %v1746
    %1826 = vmatprep.subr.bf16.mxu0 0
    %1827 = vmatpush1.bf16.msra.mxu0 %v1747
    %1828 = vmatprep.subr.bf16.mxu0 0
    %1829 = vmatpush1.bf16.msra.mxu0 %v1748
    %1830 = vmatprep.subr.bf16.mxu0 0
    %1831 = vmatpush1.bf16.msra.mxu0 0
    %1832 = vmatprep.subr.bf16.mxu0 0
    %1833 = vmatpush1.bf16.msra.mxu0 0
    %1834 = vmatprep.subr.bf16.mxu0 0
    %1835 = vmatpush1.bf16.msra.mxu0 0
    %1836 = vmatprep.subr.bf16.mxu0 0
    %1837 = vmatpush1.bf16.msra.mxu0 0
    %1838 = vmatprep.subr.bf16.mxu0 0
    %1839 = vmatpush1.bf16.msra.mxu0 0
    %1840 = vmatprep.subr.bf16.mxu0 0
    %1841 = vmatpush1.bf16.msra.mxu0 0
    %1842 = vmatprep.subr.bf16.mxu0 0
    %1843 = vmatpush1.bf16.msra.mxu0 0
    %1844 = vmatprep.subr.bf16.mxu0 0
    %1845 = vmatpush1.bf16.msra.mxu0 0
    %1846 = vmatprep.mubr.bf16.mxu0 0
    %1847 = vmatmul.mubr.bf16.gmra.mrb[0].mxu0 %v1573
    %v1848 = vpop.f32.mrb[0].mxu0
    %v1849 = vadd.f32 %v1808, %v1848
    %v1850 = vpop.f32.mrb[0].mxu0
    %v1851 = vpop.f32.mrb[0].mxu0
    %v1852 = vadd.f32 %v1811, %v1851
    %v1853 = vpop.f32.mrb[0].mxu0
    %1854 = vdwg.mxu0
    %v1855 = vmax.f32 %v1849, 0.0
    %v1856 = vmax.f32 %v1852, 0.0
    %v1857 = vpack.c.bf16 %v1856, %v1855
    %v1858 = vld [vmem:[%s10] sm:$0xf]
    %v1859 = vld [vmem:[%s10 + $0x4] sm:$0xf]
    %v1860 = vld [vmem:[%s10 + $0x8] sm:$0xf]
    %v1864 = vunpack.c.l.b16 %v1858
    %v1865 = vunpack.c.l.b16 %v1859
    %v1866 = vunpack.c.l.b16 %v1860
    %v1867 = vpack.c.b16 %v1865, %v1864
    %v1868 = vpack.c.b16 %v1866, %v1866
    %vm1869 = vcmask 130048
    %v1871 = vsel %vm1869, %v1867, 0
    %v1874 = vsel %vm1869, %v1868, 0
    %1876 = vmatprep.subr.bf16.mxu0 0
    %1877 = vmatpush1.bf16.msra.mxu0 %v1857
    %1878 = vmatprep.subr.bf16.mxu0 0
    %1879 = vmatpush1.bf16.msra.mxu0 0
    %1880 = vmatprep.subr.bf16.mxu0 0
    %1881 = vmatpush1.bf16.msra.mxu0 0
    %1882 = vmatprep.subr.bf16.mxu0 0
    %1883 = vmatpush1.bf16.msra.mxu0 0
    %1884 = vmatprep.subr.bf16.mxu0 0
    %1885 = vmatpush1.bf16.msra.mxu0 0
    %1886 = vmatprep.subr.bf16.mxu0 0
    %1887 = vmatpush1.bf16.msra.mxu0 0
    %1888 = vmatprep.subr.bf16.mxu0 0
    %1889 = vmatpush1.bf16.msra.mxu0 0
    %1890 = vmatprep.subr.bf16.mxu0 0
    %1891 = vmatpush1.bf16.msra.mxu0 0
    %1892 = vmatprep.subr.bf16.mxu0 0
    %1893 = vmatpush1.bf16.msra.mxu0 0
    %1894 = vmatprep.subr.bf16.mxu0 0
    %1895 = vmatpush1.bf16.msra.mxu0 0
    %1896 = vmatprep.subr.bf16.mxu0 0
    %1897 = vmatpush1.bf16.msra.mxu0 0
    %1898 = vmatprep.subr.bf16.mxu0 0
    %1899 = vmatpush1.bf16.msra.mxu0 0
    %1900 = vmatprep.subr.bf16.mxu0 0
    %1901 = vmatpush1.bf16.msra.mxu0 0
    %1902 = vmatprep.subr.bf16.mxu0 0
    %1903 = vmatpush1.bf16.msra.mxu0 0
    %1904 = vmatprep.subr.bf16.mxu0 0
    %1905 = vmatpush1.bf16.msra.mxu0 0
    %1906 = vmatprep.subr.bf16.mxu0 0
    %1907 = vmatpush1.bf16.msra.mxu0 0
    %1908 = vmatprep.mubr.bf16.mxu0 0
    %1909 = vmatmul.mubr.bf16.gmra.mrb[0].mxu0 %v1871
    %v1910 = vpop.f32.mrb[0].mxu0
    %v1911 = vadd.f32 0.0, %v1910
    %v1912 = vpop.f32.mrb[0].mxu0
    %v1913 = vpop.f32.mrb[0].mxu0
    %v1914 = vadd.f32 0.0, %v1913
    %v1915 = vpop.f32.mrb[0].mxu0
    %1916 = vmatprep.mubr.bf16.mxu0 0
    %1917 = vmatmul.mubr.bf16.gmra.mrb[0].mxu0 %v1874
    %v1918 = vpop.f32.mrb[0].mxu0
    %v1919 = vadd.f32 0.0, %v1918
    %v1920 = vpop.f32.mrb[0].mxu0
    %v1921 = vpop.f32.mrb[0].mxu0
    %v1922 = vpop.f32.mrb[0].mxu0
    %1923 = vdwg.mxu0
    %v1924 = vpack.c.bf16 %v1911, %v1911
    %v1925 = vpack.c.bf16 %v1914, %v1914
    %v1926 = vpack.c.bf16 %v1919, %v1919
    %v1927 = vld [vmem:[%s11] sm:$0xf]
    %v1928 = vld [vmem:[%s11 + $0x4] sm:$0xf]
    %v1929 = vld [vmem:[%s11 + $0x8] sm:$0xf]
    %v1930 = vld [vmem:[%s11 + $0xc] sm:$0xf]
    %v1931 = vld [vmem:[%s11 + $0x10] sm:$0xf]
    %v1932 = vld [vmem:[%s11 + $0x14] sm:$0xf]
    %v1933 = vld [vmem:[%s11 + $0x18] sm:$0xf]
    %v1934 = vld [vmem:[%s11 + $0x1c] sm:$0xf]
    %v1935 = vld [vmem:[%s11 + $0x20] sm:$0xf]
    %v1936 = vld [vmem:[%s11 + $0x24] sm:$0xf]
    %v1937 = vld [vmem:[%s11 + $0x28] sm:$0xf]
    %v1938 = vld [vmem:[%s11 + $0x2c] sm:$0xf]
    %v1939 = vld [vmem:[%s11 + $0x30] sm:$0xf]
    %v1940 = vld [vmem:[%s11 + $0x34] sm:$0xf]
    %v1941 = vld [vmem:[%s11 + $0x38] sm:$0xf]
    %v1942 = vld [vmem:[%s11 + $0x3c] sm:$0xf]
    %v1943 = vld [vmem:[%s11 + $0x40] sm:$0xf]
    %v1944 = vld [vmem:[%s11 + $0x44] sm:$0xf]
    %v1945 = vld [vmem:[%s11 + $0x48] sm:$0xf]
    %v1946 = vld [vmem:[%s11 + $0x4c] sm:$0xf]
    %v1947 = vld [vmem:[%s11 + $0x50] sm:$0xf]
    %v1948 = vld [vmem:[%s11 + $0x54] sm:$0xf]
    %v1949 = vld [vmem:[%s11 + $0x58] sm:$0xf]
    %v1950 = vld [vmem:[%s11 + $0x5c] sm:$0xf]
    %v1951 = vld [vmem:[%s11 + $0x60] sm:$0xf]
    %v1952 = vld [vmem:[%s11 + $0x64] sm:$0xf]
    %v1953 = vld [vmem:[%s11 + $0x68] sm:$0xf]
    %v1954 = vld [vmem:[%s11 + $0x6c] sm:$0xf]
    %v1955 = vld [vmem:[%s11 + $0x70] sm:$0xf]
    %v1956 = vld [vmem:[%s11 + $0x74] sm:$0xf]
    %v1957 = vld [vmem:[%s11 + $0x78] sm:$0xf]
    %v1958 = vld [vmem:[%s11 + $0x7c] sm:$0xf]
    %v1959 = vld [vmem:[%s11 + $0x80] sm:$0xf]
    %v1960 = vld [vmem:[%s11 + $0x84] sm:$0xf]
    %v1961 = vld [vmem:[%s11 + $0x88] sm:$0xf]
    %v1962 = vld [vmem:[%s11 + $0x8c] sm:$0xf]
    %v1963 = vld [vmem:[%s11 + $0x90] sm:$0xf]
    %v1964 = vld [vmem:[%s11 + $0x94] sm:$0xf]
    %v1965 = vld [vmem:[%s11 + $0x98] sm:$0xf]
    %v1966 = vld [vmem:[%s11 + $0x9c] sm:$0xf]
    %v1967 = vld [vmem:[%s11 + $0xa0] sm:$0xf]
    %v1968 = vld [vmem:[%s11 + $0xa4] sm:$0xf]
    %v1969 = vld [vmem:[%s11 + $0xa8] sm:$0xf]
    %v1970 = vld [vmem:[%s11 + $0xac] sm:$0xf]
    %v1971 = vld [vmem:[%s11 + $0xb0] sm:$0xf]
    %v1972 = vld [vmem:[%s11 + $0xb4] sm:$0xf]
    %v1973 = vld [vmem:[%s11 + $0xb8] sm:$0xf]
    %v1974 = vld [vmem:[%s11 + $0xbc] sm:$0xf]
    %v1975 = vld [vmem:[%s12] sm:$0x1]
    %v1977 = vlaneseq
    %v1978 = vshrl.u32 %v1977, 7
    %v1979 = vsub.s32 0, %v1978
    %v1980 = vrot.slane %v1975, %v1979
    %v2030 = vunpack.c.l.b16 %v1927
    %v2031 = vunpack.c.l.b16 %v1928
    %v2032 = vunpack.c.l.b16 %v1929
    %v2033 = vunpack.c.l.b16 %v1930
    %v2034 = vunpack.c.l.b16 %v1931
    %v2035 = vunpack.c.l.b16 %v1932
    %v2036 = vunpack.c.l.b16 %v1933
    %v2037 = vunpack.c.l.b16 %v1934
    %v2038 = vunpack.c.l.b16 %v1935
    %v2039 = vunpack.c.l.b16 %v1936
    %v2040 = vunpack.c.l.b16 %v1937
    %v2041 = vunpack.c.l.b16 %v1938
    %v2042 = vunpack.c.l.b16 %v1939
    %v2043 = vunpack.c.l.b16 %v1940
    %v2044 = vunpack.c.l.b16 %v1941
    %v2045 = vunpack.c.l.b16 %v1942
    %v2046 = vunpack.c.l.b16 %v1943
    %v2047 = vunpack.c.l.b16 %v1944
    %v2048 = vunpack.c.l.b16 %v1945
    %v2049 = vunpack.c.l.b16 %v1946
    %v2050 = vunpack.c.l.b16 %v1947
    %v2051 = vunpack.c.l.b16 %v1948
    %v2052 = vunpack.c.l.b16 %v1949
    %v2053 = vunpack.c.l.b16 %v1950
    %v2054 = vunpack.c.l.b16 %v1951
    %v2055 = vunpack.c.l.b16 %v1952
    %v2056 = vunpack.c.l.b16 %v1953
    %v2057 = vunpack.c.l.b16 %v1954
    %v2058 = vunpack.c.l.b16 %v1955
    %v2059 = vunpack.c.l.b16 %v1956
    %v2060 = vunpack.c.l.b16 %v1957
    %v2061 = vunpack.c.l.b16 %v1958
    %v2062 = vunpack.c.l.b16 %v1959
    %v2063 = vunpack.c.l.b16 %v1960
    %v2064 = vunpack.c.l.b16 %v1961
    %v2065 = vunpack.c.l.b16 %v1962
    %v2066 = vunpack.c.l.b16 %v1963
    %v2067 = vunpack.c.l.b16 %v1964
    %v2068 = vunpack.c.l.b16 %v1965
    %v2069 = vunpack.c.l.b16 %v1966
    %v2070 = vunpack.c.l.b16 %v1967
    %v2071 = vunpack.c.l.b16 %v1968
    %v2072 = vunpack.c.l.b16 %v1969
    %v2073 = vunpack.c.l.b16 %v1970
    %v2074 = vunpack.c.l.b16 %v1971
    %v2075 = vunpack.c.l.b16 %v1972
    %v2076 = vunpack.c.l.b16 %v1973
    %v2077 = vunpack.c.l.b16 %v1974
    %v2078 = vpack.c.b16 %v2031, %v2030
    %v2079 = vpack.c.b16 %v2033, %v2032
    %v2080 = vpack.c.b16 %v2035, %v2034
    %v2081 = vpack.c.b16 %v2037, %v2036
    %v2082 = vpack.c.b16 %v2039, %v2038
    %v2083 = vpack.c.b16 %v2041, %v2040
    %v2084 = vpack.c.b16 %v2043, %v2042
    %v2085 = vpack.c.b16 %v2045, %v2044
    %v2086 = vpack.c.b16 %v2047, %v2046
    %v2087 = vpack.c.b16 %v2049, %v2048
    %v2088 = vpack.c.b16 %v2051, %v2050
    %v2089 = vpack.c.b16 %v2053, %v2052
    %v2090 = vpack.c.b16 %v2055, %v2054
    %v2091 = vpack.c.b16 %v2057, %v2056
    %v2092 = vpack.c.b16 %v2059, %v2058
    %v2093 = vpack.c.b16 %v2061, %v2060
    %v2094 = vpack.c.b16 %v2063, %v2062
    %v2095 = vpack.c.b16 %v2065, %v2064
    %v2096 = vpack.c.b16 %v2067, %v2066
    %v2097 = vpack.c.b16 %v2069, %v2068
    %v2098 = vpack.c.b16 %v2071, %v2070
    %v2099 = vpack.c.b16 %v2073, %v2072
    %v2100 = vpack.c.b16 %v2075, %v2074
    %v2101 = vpack.c.b16 %v2077, %v2076
    %2126 = vmatprep.subr.bf16.mxu0 0
    %2127 = vmatpush1.bf16.msra.mxu0 %v2078
    %2128 = vmatprep.subr.bf16.mxu0 0
    %2129 = vmatpush1.bf16.msra.mxu0 %v2079
    %2130 = vmatprep.subr.bf16.mxu0 0
    %2131 = vmatpush1.bf16.msra.mxu0 %v2080
    %2132 = vmatprep.subr.bf16.mxu0 0
    %2133 = vmatpush1.bf16.msra.mxu0 %v2081
    %2134 = vmatprep.subr.bf16.mxu0 0
    %2135 = vmatpush1.bf16.msra.mxu0 %v2082
    %2136 = vmatprep.subr.bf16.mxu0 0
    %2137 = vmatpush1.bf16.msra.mxu0 %v2083
    %2138 = vmatprep.subr.bf16.mxu0 0
    %2139 = vmatpush1.bf16.msra.mxu0 %v2084
    %2140 = vmatprep.subr.bf16.mxu0 0
    %2141 = vmatpush1.bf16.msra.mxu0 %v2085
    %2142 = vmatprep.subr.bf16.mxu0 0
    %2143 = vmatpush1.bf16.msra.mxu0 %v2086
    %2144 = vmatprep.subr.bf16.mxu0 0
    %2145 = vmatpush1.bf16.msra.mxu0 %v2087
    %2146 = vmatprep.subr.bf16.mxu0 0
    %2147 = vmatpush1.bf16.msra.mxu0 %v2088
    %2148 = vmatprep.subr.bf16.mxu0 0
    %2149 = vmatpush1.bf16.msra.mxu0 %v2089
    %2150 = vmatprep.subr.bf16.mxu0 0
    %2151 = vmatpush1.bf16.msra.mxu0 %v2090
    %2152 = vmatprep.subr.bf16.mxu0 0
    %2153 = vmatpush1.bf16.msra.mxu0 %v2091
    %2154 = vmatprep.subr.bf16.mxu0 0
    %2155 = vmatpush1.bf16.msra.mxu0 %v2092
    %2156 = vmatprep.subr.bf16.mxu0 0
    %2157 = vmatpush1.bf16.msra.mxu0 %v2093
    %2158 = vmatprep.mubr.bf16.mxu0 %v1925
    %2159 = vmatmul.mubr.bf16.gmra.mrb[0].mxu0 %v1924
    %v2160 = vpop.f32.mrb[0].mxu0
    %v2161 = vadd.f32 %v1980, %v2160
    %v2162 = vpop.f32.mrb[0].mxu0
    %v2163 = vpop.f32.mrb[0].mxu0
    %v2164 = vpop.f32.mrb[0].mxu0
    %2165 = vdwg.mxu0
    %2166 = vmatprep.subr.bf16.mxu0 0
    %2167 = vmatpush1.bf16.msra.mxu0 %v2094
    %2168 = vmatprep.subr.bf16.mxu0 0
    %2169 = vmatpush1.bf16.msra.mxu0 %v2095
    %2170 = vmatprep.subr.bf16.mxu0 0
    %2171 = vmatpush1.bf16.msra.mxu0 %v2096
    %2172 = vmatprep.subr.bf16.mxu0 0
    %2173 = vmatpush1.bf16.msra.mxu0 %v2097
    %2174 = vmatprep.subr.bf16.mxu0 0
    %2175 = vmatpush1.bf16.msra.mxu0 %v2098
    %2176 = vmatprep.subr.bf16.mxu0 0
    %2177 = vmatpush1.bf16.msra.mxu0 %v2099
    %2178 = vmatprep.subr.bf16.mxu0 0
    %2179 = vmatpush1.bf16.msra.mxu0 %v2100
    %2180 = vmatprep.subr.bf16.mxu0 0
    %2181 = vmatpush1.bf16.msra.mxu0 %v2101
    %2182 = vmatprep.subr.bf16.mxu0 0
    %2183 = vmatpush1.bf16.msra.mxu0 0
    %2184 = vmatprep.subr.bf16.mxu0 0
    %2185 = vmatpush1.bf16.msra.mxu0 0
    %2186 = vmatprep.subr.bf16.mxu0 0
    %2187 = vmatpush1.bf16.msra.mxu0 0
    %2188 = vmatprep.subr.bf16.mxu0 0
    %2189 = vmatpush1.bf16.msra.mxu0 0
    %2190 = vmatprep.subr.bf16.mxu0 0
    %2191 = vmatpush1.bf16.msra.mxu0 0
    %2192 = vmatprep.subr.bf16.mxu0 0
    %2193 = vmatpush1.bf16.msra.mxu0 0
    %2194 = vmatprep.subr.bf16.mxu0 0
    %2195 = vmatpush1.bf16.msra.mxu0 0
    %2196 = vmatprep.subr.bf16.mxu0 0
    %2197 = vmatpush1.bf16.msra.mxu0 0
    %2198 = vmatprep.mubr.bf16.mxu0 0
    %2199 = vmatmul.mubr.bf16.gmra.mrb[0].mxu0 %v1926
    %v2200 = vpop.f32.mrb[0].mxu0
    %v2201 = vadd.f32 %v2161, %v2200
    %v2202 = vpop.f32.mrb[0].mxu0
    %v2203 = vpop.f32.mrb[0].mxu0
    %v2204 = vpop.f32.mrb[0].mxu0
    %2205 = vdwg.mxu0
    %v2206 = vmax.f32 %v2201, 0.0
    %2208 = vrot.lane.b32.xlu0 %v2206, 96
    %v2209 = vpop.permute.xlu0 %2208
    %v2211 = vmax.f32 %v2206, %v2209
    %v2212 = vld [vmem:[%s13] sm:$0xff]
    %vm2213 = vcmask 64512
    %v2215 = vsel %vm2213, %v2212, 0
    %2217 = vmatprep.subr.mxu0 0.0
    %2218 = vmatpush1.msra.mxu0 %v2211
    %2219 = vmatprep.subr.mxu0 0.0
    %2220 = vmatpush1.msra.mxu0 0.0
    %2221 = vmatprep.subr.mxu0 0.0
    %2222 = vmatpush1.msra.mxu0 0.0
    %2223 = vmatprep.subr.mxu0 0.0
    %2224 = vmatpush1.msra.mxu0 0.0
    %2225 = vmatprep.subr.mxu0 0.0
    %2226 = vmatpush1.msra.mxu0 0.0
    %2227 = vmatprep.subr.mxu0 0.0
    %2228 = vmatpush1.msra.mxu0 0.0
    %2229 = vmatprep.subr.mxu0 0.0
    %2230 = vmatpush1.msra.mxu0 0.0
    %2231 = vmatprep.subr.mxu0 0.0
    %2232 = vmatpush1.msra.mxu0 0.0
    %2233 = vmatprep.subr.mxu0 0.0
    %2234 = vmatpush1.msra.mxu0 0.0
    %2235 = vmatprep.subr.mxu0 0.0
    %2236 = vmatpush1.msra.mxu0 0.0
    %2237 = vmatprep.subr.mxu0 0.0
    %2238 = vmatpush1.msra.mxu0 0.0
    %2239 = vmatprep.subr.mxu0 0.0
    %2240 = vmatpush1.msra.mxu0 0.0
    %2241 = vmatprep.subr.mxu0 0.0
    %2242 = vmatpush1.msra.mxu0 0.0
    %2243 = vmatprep.subr.mxu0 0.0
    %2244 = vmatpush1.msra.mxu0 0.0
    %2245 = vmatprep.subr.mxu0 0.0
    %2246 = vmatpush1.msra.mxu0 0.0
    %2247 = vmatprep.subr.mxu0 0.0
    %2248 = vmatpush1.msra.mxu0 0.0
    %2249 = vmatprep.subr.mxu0 0.0
    %2250 = vmatpush1.msra.mxu0 0.0
    %2251 = vmatprep.subr.mxu0 0.0
    %2252 = vmatpush1.msra.mxu0 0.0
    %2253 = vmatprep.subr.mxu0 0.0
    %2254 = vmatpush1.msra.mxu0 0.0
    %2255 = vmatprep.subr.mxu0 0.0
    %2256 = vmatpush1.msra.mxu0 0.0
    %2257 = vmatprep.subr.mxu0 0.0
    %2258 = vmatpush1.msra.mxu0 0.0
    %2259 = vmatprep.subr.mxu0 0.0
    %2260 = vmatpush1.msra.mxu0 0.0
    %2261 = vmatprep.subr.mxu0 0.0
    %2262 = vmatpush1.msra.mxu0 0.0
    %2263 = vmatprep.subr.mxu0 0.0
    %2264 = vmatpush1.msra.mxu0 0.0
    %2265 = vmatprep.subr.mxu0 0.0
    %2266 = vmatpush1.msra.mxu0 0.0
    %2267 = vmatprep.subr.mxu0 0.0
    %2268 = vmatpush1.msra.mxu0 0.0
    %2269 = vmatprep.subr.mxu0 0.0
    %2270 = vmatpush1.msra.mxu0 0.0
    %2271 = vmatprep.subr.mxu0 0.0
    %2272 = vmatpush1.msra.mxu0 0.0
    %2273 = vmatprep.subr.mxu0 0.0
    %2274 = vmatpush1.msra.mxu0 0.0
    %2275 = vmatprep.subr.mxu0 0.0
    %2276 = vmatpush1.msra.mxu0 0.0
    %2277 = vmatprep.subr.mxu0 0.0
    %2278 = vmatpush1.msra.mxu0 0.0
    %2279 = vmatprep.subr.mxu0 0.0
    %2280 = vmatpush1.msra.mxu0 0.0
    %2281 = vmatprep.mubr.f32.mxu0 0.0
    %2282 = vmatmul.mubr.f32.gmra.mrb[0].mxu0 %v2215
    %v2283 = vpop.f32.mrb[0].mxu0
    %v2284 = vadd.f32 0.0, %v2283
    %v2285 = vpop.f32.mrb[0].mxu0
    %2286 = vdwg.mxu0
    %v2288 = vrot.slane %v2284, 4
    %v2290 = vmax.f32 %v2284, %v2288
    %v2291 = vld [vmem:[%s14] sm:$0xff]
    %v2292 = vld [vmem:[%s14 + $0x8] sm:$0xff]
    %v2293 = vld [vmem:[%s14 + $0x10] sm:$0xff]
    %v2294 = vld [vmem:[%s14 + $0x18] sm:$0xff]
    %v2295 = vld [vmem:[%s15] sm:$0x1]
    %v2297 = vlaneseq
    %v2298 = vshrl.u32 %v2297, 7
    %v2299 = vsub.s32 0, %v2298
    %v2300 = vrot.slane %v2295, %v2299
    %v2303 = vsel %vm1504, %v2290, 0
    %2305 = vmatprep.subr.mxu0 0.0
    %2306 = vmatpush1.msra.mxu0 %v2291
    %2307 = vmatprep.subr.mxu0 0.0
    %2308 = vmatpush1.msra.mxu0 %v2292
    %2309 = vmatprep.subr.mxu0 0.0
    %2310 = vmatpush1.msra.mxu0 %v2293
    %2311 = vmatprep.subr.mxu0 0.0
    %2312 = vmatpush1.msra.mxu0 %v2294
    %2313 = vmatprep.subr.mxu0 0.0
    %2314 = vmatpush1.msra.mxu0 0.0
    %2315 = vmatprep.subr.mxu0 0.0
    %2316 = vmatpush1.msra.mxu0 0.0
    %2317 = vmatprep.subr.mxu0 0.0
    %2318 = vmatpush1.msra.mxu0 0.0
    %2319 = vmatprep.subr.mxu0 0.0
    %2320 = vmatpush1.msra.mxu0 0.0
    %2321 = vmatprep.subr.mxu0 0.0
    %2322 = vmatpush1.msra.mxu0 0.0
    %2323 = vmatprep.subr.mxu0 0.0
    %2324 = vmatpush1.msra.mxu0 0.0
    %2325 = vmatprep.subr.mxu0 0.0
    %2326 = vmatpush1.msra.mxu0 0.0
    %2327 = vmatprep.subr.mxu0 0.0
    %2328 = vmatpush1.msra.mxu0 0.0
    %2329 = vmatprep.subr.mxu0 0.0
    %2330 = vmatpush1.msra.mxu0 0.0
    %2331 = vmatprep.subr.mxu0 0.0
    %2332 = vmatpush1.msra.mxu0 0.0
    %2333 = vmatprep.subr.mxu0 0.0
    %2334 = vmatpush1.msra.mxu0 0.0
    %2335 = vmatprep.subr.mxu0 0.0
    %2336 = vmatpush1.msra.mxu0 0.0
    %2337 = vmatprep.subr.mxu0 0.0
    %2338 = vmatpush1.msra.mxu0 0.0
    %2339 = vmatprep.subr.mxu0 0.0
    %2340 = vmatpush1.msra.mxu0 0.0
    %2341 = vmatprep.subr.mxu0 0.0
    %2342 = vmatpush1.msra.mxu0 0.0
    %2343 = vmatprep.subr.mxu0 0.0
    %2344 = vmatpush1.msra.mxu0 0.0
    %2345 = vmatprep.subr.mxu0 0.0
    %2346 = vmatpush1.msra.mxu0 0.0
    %2347 = vmatprep.subr.mxu0 0.0
    %2348 = vmatpush1.msra.mxu0 0.0
    %2349 = vmatprep.subr.mxu0 0.0
    %2350 = vmatpush1.msra.mxu0 0.0
    %2351 = vmatprep.subr.mxu0 0.0
    %2352 = vmatpush1.msra.mxu0 0.0
    %2353 = vmatprep.subr.mxu0 0.0
    %2354 = vmatpush1.msra.mxu0 0.0
    %2355 = vmatprep.subr.mxu0 0.0
    %2356 = vmatpush1.msra.mxu0 0.0
    %2357 = vmatprep.subr.mxu0 0.0
    %2358 = vmatpush1.msra.mxu0 0.0
    %2359 = vmatprep.subr.mxu0 0.0
    %2360 = vmatpush1.msra.mxu0 0.0
    %2361 = vmatprep.subr.mxu0 0.0
    %2362 = vmatpush1.msra.mxu0 0.0
    %2363 = vmatprep.subr.mxu0 0.0
    %2364 = vmatpush1.msra.mxu0 0.0
    %2365 = vmatprep.subr.mxu0 0.0
    %2366 = vmatpush1.msra.mxu0 0.0
    %2367 = vmatprep.subr.mxu0 0.0
    %2368 = vmatpush1.msra.mxu0 0.0
    %2369 = vmatprep.mubr.f32.mxu0 0.0
    %2370 = vmatmul.mubr.f32.gmra.mrb[0].mxu0 %v2303
    %v2371 = vpop.f32.mrb[0].mxu0
    %v2372 = vadd.f32 %v2300, %v2371
    %v2373 = vpop.f32.mrb[0].mxu0
    %2374 = vdwg.mxu0
    %v2375 = vmax.f32 %v2372, 0.0
    %v2376 = vld [vmem:[%s16] sm:$0xff]
    %v2377 = vld [vmem:[%s16 + $0x8] sm:$0xff]
    %v2378 = vld [vmem:[%s16 + $0x10] sm:$0xff]
    %v2379 = vld [vmem:[%s16 + $0x18] sm:$0xff]
    %v2380 = vld [vmem:[%s16 + $0x20] sm:$0xff]
    %v2381 = vld [vmem:[%s16 + $0x28] sm:$0xff]
    %v2382 = vld [vmem:[%s16 + $0x30] sm:$0xff]
    %v2383 = vld [vmem:[%s16 + $0x38] sm:$0xff]
    %v2384 = vld [vmem:[%s16 + $0x40] sm:$0xff]
    %v2385 = vld [vmem:[%s16 + $0x48] sm:$0xff]
    %v2386 = vld [vmem:[%s16 + $0x50] sm:$0xff]
    %v2387 = vld [vmem:[%s16 + $0x58] sm:$0xff]
    %v2388 = vld [vmem:[%s16 + $0x60] sm:$0xff]
    %v2389 = vld [vmem:[%s16 + $0x68] sm:$0xff]
    %v2390 = vld [vmem:[%s16 + $0x70] sm:$0xff]
    %v2391 = vld [vmem:[%s16 + $0x78] sm:$0xff]
    %v2392 = vld [vmem:[%s17] sm:$0x1]
    %v2394 = vlaneseq
    %v2395 = vshrl.u32 %v2394, 7
    %v2396 = vsub.s32 0, %v2395
    %v2397 = vrot.slane %v2392, %v2396
    %2399 = vmatprep.subr.mxu0 0.0
    %2400 = vmatpush1.msra.mxu0 %v2376
    %2401 = vmatprep.subr.mxu0 0.0
    %2402 = vmatpush1.msra.mxu0 %v2377
    %2403 = vmatprep.subr.mxu0 0.0
    %2404 = vmatpush1.msra.mxu0 %v2378
    %2405 = vmatprep.subr.mxu0 0.0
    %2406 = vmatpush1.msra.mxu0 %v2379
    %2407 = vmatprep.subr.mxu0 0.0
    %2408 = vmatpush1.msra.mxu0 %v2380
    %2409 = vmatprep.subr.mxu0 0.0
    %2410 = vmatpush1.msra.mxu0 %v2381
    %2411 = vmatprep.subr.mxu0 0.0
    %2412 = vmatpush1.msra.mxu0 %v2382
    %2413 = vmatprep.subr.mxu0 0.0
    %2414 = vmatpush1.msra.mxu0 %v2383
    %2415 = vmatprep.subr.mxu0 0.0
    %2416 = vmatpush1.msra.mxu0 %v2384
    %2417 = vmatprep.subr.mxu0 0.0
    %2418 = vmatpush1.msra.mxu0 %v2385
    %2419 = vmatprep.subr.mxu0 0.0
    %2420 = vmatpush1.msra.mxu0 %v2386
    %2421 = vmatprep.subr.mxu0 0.0
    %2422 = vmatpush1.msra.mxu0 %v2387
    %2423 = vmatprep.subr.mxu0 0.0
    %2424 = vmatpush1.msra.mxu0 %v2388
    %2425 = vmatprep.subr.mxu0 0.0
    %2426 = vmatpush1.msra.mxu0 %v2389
    %2427 = vmatprep.subr.mxu0 0.0
    %2428 = vmatpush1.msra.mxu0 %v2390
    %2429 = vmatprep.subr.mxu0 0.0
    %2430 = vmatpush1.msra.mxu0 %v2391
    %2431 = vmatprep.subr.mxu0 0.0
    %2432 = vmatpush1.msra.mxu0 0.0
    %2433 = vmatprep.subr.mxu0 0.0
    %2434 = vmatpush1.msra.mxu0 0.0
    %2435 = vmatprep.subr.mxu0 0.0
    %2436 = vmatpush1.msra.mxu0 0.0
    %2437 = vmatprep.subr.mxu0 0.0
    %2438 = vmatpush1.msra.mxu0 0.0
    %2439 = vmatprep.subr.mxu0 0.0
    %2440 = vmatpush1.msra.mxu0 0.0
    %2441 = vmatprep.subr.mxu0 0.0
    %2442 = vmatpush1.msra.mxu0 0.0
    %2443 = vmatprep.subr.mxu0 0.0
    %2444 = vmatpush1.msra.mxu0 0.0
    %2445 = vmatprep.subr.mxu0 0.0
    %2446 = vmatpush1.msra.mxu0 0.0
    %2447 = vmatprep.subr.mxu0 0.0
    %2448 = vmatpush1.msra.mxu0 0.0
    %2449 = vmatprep.subr.mxu0 0.0
    %2450 = vmatpush1.msra.mxu0 0.0
    %2451 = vmatprep.subr.mxu0 0.0
    %2452 = vmatpush1.msra.mxu0 0.0
    %2453 = vmatprep.subr.mxu0 0.0
    %2454 = vmatpush1.msra.mxu0 0.0
    %2455 = vmatprep.subr.mxu0 0.0
    %2456 = vmatpush1.msra.mxu0 0.0
    %2457 = vmatprep.subr.mxu0 0.0
    %2458 = vmatpush1.msra.mxu0 0.0
    %2459 = vmatprep.subr.mxu0 0.0
    %2460 = vmatpush1.msra.mxu0 0.0
    %2461 = vmatprep.subr.mxu0 0.0
    %2462 = vmatpush1.msra.mxu0 0.0
    %2463 = vmatprep.mubr.f32.mxu0 0.0
    %2464 = vmatmul.mubr.f32.gmra.mrb[0].mxu0 %v2375
    %v2465 = vpop.f32.mrb[0].mxu0
    %v2466 = vadd.f32 %v2397, %v2465
    %v2467 = vpop.f32.mrb[0].mxu0
    %2468 = vdwg.mxu0
    %2469 = vst [vmem:[#allocation2] sm:$0xf] %v2466
    // Predicated region
    $region74: #{complex_cnn_forward.1} parent=1 // pred_check
      _
    $region75: #{complex_cnn_forward.1} parent=1 // pred_check_branch
      %2471 = sbr.rel (0) target = $region77
    $region76: #{complex_cnn_forward.1} parent=1 // pred_region
      %s2473 = ssub.s32 64, 64
      %2474 = vsyncadd [#allocation3], %s2473
      %s2476 = sshll.u32 [#allocation2], 4
      %s2477 = int_to_ptr.vmem [resolvable:$true] %s2476
      %2479 = dma.vmem_to_hbm [thread:$0]  %s2477, 64, %s18, [#allocation3]
    $region77: #{complex_cnn_forward.1} parent=1 // pred_fallthru
      _
    // Predicated region
    $region78: #{complex_cnn_forward.1} parent=1 // pred_check
      _
    $region79: #{complex_cnn_forward.1} parent=1 // pred_check_branch
      %2481 = sbr.rel (0) target = $region81
    $region80: #{complex_cnn_forward.1} parent=1 // pred_region
      %2482 = dma.done [#allocation3], 64
    $region81: #{complex_cnn_forward.1} parent=1 // pred_fallthru
      _
    %2483 = vsyncpa [#allocation3], 1

</llo_original>
